<compile_context>
chip_gen: v7x
topology: tpu7x:2x2x1
jax: 0.10.0
libtpu: 0.0.40
codegen_flags: <defaults>
</compile_context>

<pallas_src>
import functools

import jax
import jax.numpy as jnp
from jax import lax
from jax.experimental import pallas as pl
from jax.experimental.pallas import tpu as pltpu

SNAKE_EPS = 1e-9


def _round_up(v, m):
    return (v + m - 1) // m * m


def _residual_unit_kernel(xc_ref, xl_ref, xr_ref,
                          a1_ref, ia1_ref, w1s_ref, b1_ref,
                          a2_ref, ia2_ref, w2_ref, b2_ref,
                          o_ref, *, ksize, dilation, pad):
    """One (sample, length-tile) grid step.  All blocks are O(l_tile).

    xc_ref : (1, C, l_tile)  current tile (lane aligned)
    xl_ref : (1, C, 128)     128-chunk immediately left of the tile (clamped at sample start)
    xr_ref : (1, C, 128)     128-chunk immediately right of the tile (clamped at sample end)
    o_ref  : (1, C, l_tile)  output tile (lane-dense stores)
    """
    t = pl.program_id(1)
    nt = pl.num_programs(1)
    l_tile = o_ref.shape[2]

    # Conv halo (pad columns per side).  snake(0) == 0, so zeroing x at the sample
    # edges reproduces the module's zero padding of the snake output exactly.
    lft = xl_ref[0, :, 128 - pad:] * (t > 0).astype(jnp.float32)
    rgt = xr_ref[0, :, :pad] * (t < nt - 1).astype(jnp.float32)

    # ---- Snake1d #1 over the haloed window: (C, l_tile + 2*pad), f32 ----
    xw = jnp.concatenate([lft, xc_ref[0], rgt], axis=1)
    a1 = a1_ref[...]
    s1 = (xw + ia1_ref[...] * jnp.square(jnp.sin(a1 * xw))).astype(jnp.bfloat16)

    # ---- 7-tap dilated conv as ONE MXU matmul: stack the shifted windows along
    #      sublanes -> (ksize*C, l_tile), contract with the (C, ksize*C) weight ----
    stacked = jnp.concatenate(
        [s1[:, j * dilation:j * dilation + l_tile] for j in range(ksize)], axis=0)
    y = jnp.dot(w1s_ref[...], stacked,
                preferred_element_type=jnp.float32) + b1_ref[...]

    # ---- Snake1d #2 ----
    a2 = a2_ref[...]
    s2 = (y + ia2_ref[...] * jnp.square(jnp.sin(a2 * y))).astype(jnp.bfloat16)

    # ---- 1x1 conv + bias + residual (fresh aligned read of the tile) ----
    z = jnp.dot(w2_ref[...], s2, preferred_element_type=jnp.float32) + b2_ref[...]
    o_ref[0] = xc_ref[0] + z


def _pick_length_tile(lp):
    """Largest lane-aligned tile (<= 4096) whose round-up padding wastes <= 12.5% of lp."""
    for cand in (4096, 2048, 1024, 512, 256, 128):
        if cand <= lp and (-lp) % cand <= lp // 8:
            return cand
    return 128


def residual_unit_forward(x, alpha1, w1, b1, alpha2, w2, b2, *, dilation=1, l_tile=None):
    """Fused ResidualUnit forward.  x: [M, C, L] (NCW, PyTorch layout) -> [M, C, L] f32."""
    x = x.astype(jnp.float32)
    M, C, L = x.shape
    ksize = w1.shape[-1]
    assert (ksize - 1) * dilation % 2 == 0, "module padding must preserve length"
    pad = (ksize - 1) * dilation // 2
    assert 1 <= pad <= 128, "dilation too large for the 128-lane halo blocks"

    # Lane-aligned tiling of the length axis.  Zero-padding x on the right and cropping
    # afterwards is exact: the extra zeros are a superset of the module's conv zero pad.
    lp = _round_up(L, 128)
    if l_tile is None:
        l_tile = _pick_length_tile(lp)
    assert l_tile % 128 == 0 and l_tile > 0
    lp = _round_up(lp, l_tile)
    n_tiles = lp // l_tile
    t128 = l_tile // 128
    n128 = lp // 128

    x_in = x if lp == L else jnp.pad(x, ((0, 0), (0, 0), (0, lp - L)))

    # Host-side parameter prep (tiny): per-channel vectors as (C, 1); the conv taps
    # flattened into one (C, ksize*C) matrix so the dilated conv is a single matmul;
    # 1/(alpha+eps) precomputed; matmul operands in bf16 (f32 MXU accumulation).
    a1 = alpha1.reshape(C, 1).astype(jnp.float32)
    a2 = alpha2.reshape(C, 1).astype(jnp.float32)
    ia1 = 1.0 / (a1 + SNAKE_EPS)
    ia2 = 1.0 / (a2 + SNAKE_EPS)
    w1s = jnp.transpose(w1, (0, 2, 1)).reshape(C, ksize * C).astype(jnp.bfloat16)
    w2m = w2[:, :, 0].astype(jnp.bfloat16)
    b1c = b1.reshape(C, 1).astype(jnp.float32)
    b2c = b2.reshape(C, 1).astype(jnp.float32)

    kernel = functools.partial(_residual_unit_kernel,
                               ksize=ksize, dilation=dilation, pad=pad)

    def const(shape):
        return pl.BlockSpec(shape, lambda m, t: (0, 0))

    out = pl.pallas_call(
        kernel,
        out_shape=jax.ShapeDtypeStruct((M, C, lp), jnp.float32),
        grid=(M, n_tiles),
        in_specs=[
            pl.BlockSpec((1, C, l_tile), lambda m, t: (m, 0, t)),            # current tile
            pl.BlockSpec((1, C, 128),                                        # left halo chunk
                         lambda m, t: (m, 0, jnp.maximum(t * t128 - 1, 0))),
            pl.BlockSpec((1, C, 128),                                        # right halo chunk
                         lambda m, t: (m, 0, jnp.minimum((t + 1) * t128, n128 - 1))),
            const((C, 1)),              # alpha1
            const((C, 1)),              # 1/(alpha1+eps)
            const((C, ksize * C)),      # fused conv1 weight (bf16)
            const((C, 1)),              # conv1 bias
            const((C, 1)),              # alpha2
            const((C, 1)),              # 1/(alpha2+eps)
            const((C, C)),              # 1x1 conv weight (bf16)
            const((C, 1)),              # conv2 bias
        ],
        out_specs=pl.BlockSpec((1, C, l_tile), lambda m, t: (m, 0, t)),
        compiler_params=pltpu.CompilerParams(
            dimension_semantics=("parallel", "parallel")),
    )(x_in, x_in, x_in, a1, ia1, w1s, b1c, a2, ia2, w2m, b2c)

    return out if lp == L else out[:, :, :L]


def _ref_forward(x, alpha1, w1, b1, alpha2, w2, b2, *, dilation,
                 matmul_dtype=jnp.float32):
    """Plain-JAX reference mirroring the PyTorch module.  matmul_dtype=bfloat16 rounds
    the conv operands exactly the way the kernel does (accumulation stays f32)."""
    M, C, L = x.shape
    ksize = w1.shape[-1]
    pad = (ksize - 1) * dilation // 2

    def snake_fn(v, alpha):
        a = alpha.reshape(1, C, 1)
        return v + (1.0 / (a + SNAKE_EPS)) * jnp.sin(a * v) ** 2

    def rnd(v):
        return v.astype(matmul_dtype).astype(jnp.float32)

    s1 = snake_fn(x, alpha1)
    s1p = jnp.pad(s1, ((0, 0), (0, 0), (pad, pad)))
    y = jnp.zeros((M, C, L), jnp.float32)
    for j in range(ksize):
        xs = s1p[:, :, j * dilation:j * dilation + L]
        y = y + jnp.einsum('oi,mil->mol', rnd(w1[:, :, j]), rnd(xs),
                           precision=lax.Precision.HIGHEST)
    y = y + b1.reshape(1, C, 1)
    s2 = snake_fn(y, alpha2)
    z = jnp.einsum('oi,mil->mol', rnd(w2[:, :, 0]), rnd(s2),
                   precision=lax.Precision.HIGHEST) + b2.reshape(1, C, 1)
    return x + z            # same length -> residual crop is a no-op


if __name__ == "__main__":
    M, C, ksize = 2, 16, 7

    def make_params(key):
        ks = jax.random.split(key, 8)
        alpha1 = jax.random.uniform(ks[0], (C,), jnp.float32, 0.5, 1.5)
        alpha2 = jax.random.uniform(ks[1], (C,), jnp.float32, 0.5, 1.5)
        # weight_norm (dim=0): w = g * v / ||v||, norm over (in_channels, k) per out channel.
        v1 = jax.random.normal(ks[2], (C, C, ksize), jnp.float32)
        g1 = jax.random.uniform(ks[3], (C,), jnp.float32, 0.5, 1.5)
        w1 = g1.reshape(C, 1, 1) * v1 / jnp.sqrt(jnp.sum(v1 ** 2, axis=(1, 2), keepdims=True))
        b1 = 0.1 * jax.random.normal(ks[4], (C,), jnp.float32)
        v2 = jax.random.normal(ks[5], (C, C, 1), jnp.float32)
        g2 = jax.random.uniform(ks[6], (C,), jnp.float32, 0.5, 1.5)
        w2 = g2.reshape(C, 1, 1) * v2 / jnp.sqrt(jnp.sum(v2 ** 2, axis=(1, 2), keepdims=True))
        b2 = 0.1 * jax.random.normal(ks[7], (C,), jnp.float32)
        return alpha1, w1, b1, alpha2, w2, b2

    root = jax.random.PRNGKey(0)
    cases = [
        # (L, dilation, l_tile): multi-tile halo path / single-tile path / pad+crop path.
        (2048, 3, 512),
        (2048, 1, None),
        (1408, 3, 512),
    ]
    for i, (L, dilation, lt) in enumerate(cases):
        kx, kp = jax.random.split(jax.random.fold_in(root, i))
        x = jax.random.normal(kx, (M, C, L), dtype=jnp.float32)
        params = make_params(kp)

        out = residual_unit_forward(x, *params, dilation=dilation, l_tile=lt)
        out = jax.block_until_ready(out)
        assert out.shape == (M, C, L), out.shape

        # Primary check: reference with matching bf16-rounded matmul operands.
        ref_bf16 = _ref_forward(x, *params, dilation=dilation, matmul_dtype=jnp.bfloat16)
        err_bf16 = float(jnp.max(jnp.abs(out - ref_bf16)))
        assert err_bf16 < 2e-2, f"case {i} (L={L}, d={dilation}): err vs bf16-ref {err_bf16}"

        # Sanity check against the full-f32 module reference (bf16 operand rounding only).
        ref_f32 = _ref_forward(x, *params, dilation=dilation, matmul_dtype=jnp.float32)
        err_f32 = float(jnp.max(jnp.abs(out - ref_f32)))
        assert err_f32 < 0.15, f"case {i} (L={L}, d={dilation}): err vs f32-ref {err_f32}"

    print("KERNEL_OK")
</pallas_src>

<mosaic_0001>
module attributes {stable_mosaic.version = 11 : i64} {
  func.func @_residual_unit_kernel(%arg0: i32, %arg1: i32, %arg2: memref<1x16x512xf32, #tpu.memory_space<vmem>>, %arg3: memref<1x16x128xf32, #tpu.memory_space<vmem>>, %arg4: memref<1x16x128xf32, #tpu.memory_space<vmem>>, %arg5: memref<16x1xf32, #tpu.memory_space<vmem>>, %arg6: memref<16x1xf32, #tpu.memory_space<vmem>>, %arg7: memref<16x112xbf16, #tpu.memory_space<vmem>>, %arg8: memref<16x1xf32, #tpu.memory_space<vmem>>, %arg9: memref<16x1xf32, #tpu.memory_space<vmem>>, %arg10: memref<16x1xf32, #tpu.memory_space<vmem>>, %arg11: memref<16x16xbf16, #tpu.memory_space<vmem>>, %arg12: memref<16x1xf32, #tpu.memory_space<vmem>>, %arg13: memref<1x16x512xf32, #tpu.memory_space<vmem>>) attributes {dimension_semantics = [#tpu.dimension_semantics<parallel>, #tpu.dimension_semantics<parallel>], iteration_bounds = array<i64: 2, 4>, scalar_prefetch = 0 : i64, scratch_operands = 0 : i64, tpu.core_type = #tpu.core_type<tc>, window_params = [{transform_indices = @transform_0, window_bounds = array<i64: 1, 16, 512>}, {transform_indices = @transform_1, window_bounds = array<i64: 1, 16, 128>}, {transform_indices = @transform_2, window_bounds = array<i64: 1, 16, 128>}, {pipeline_mode = #tpu.pipeline_mode<synchronous>, transform_indices = @transform_3, window_bounds = array<i64: 16, 1>}, {pipeline_mode = #tpu.pipeline_mode<synchronous>, transform_indices = @transform_4, window_bounds = array<i64: 16, 1>}, {pipeline_mode = #tpu.pipeline_mode<synchronous>, transform_indices = @transform_5, window_bounds = array<i64: 16, 112>}, {pipeline_mode = #tpu.pipeline_mode<synchronous>, transform_indices = @transform_6, window_bounds = array<i64: 16, 1>}, {pipeline_mode = #tpu.pipeline_mode<synchronous>, transform_indices = @transform_7, window_bounds = array<i64: 16, 1>}, {pipeline_mode = #tpu.pipeline_mode<synchronous>, transform_indices = @transform_8, window_bounds = array<i64: 16, 1>}, {pipeline_mode = #tpu.pipeline_mode<synchronous>, transform_indices = @transform_9, window_bounds = array<i64: 16, 16>}, {pipeline_mode = #tpu.pipeline_mode<synchronous>, transform_indices = @transform_10, window_bounds = array<i64: 16, 1>}, {transform_indices = @transform_11, window_bounds = array<i64: 1, 16, 512>}]} {
    %c0 = arith.constant 0 : index
    %c0_0 = arith.constant 0 : index
    %c119 = arith.constant 119 : index
    %0 = vector.load %arg3[%c0, %c0_0, %c119] : memref<1x16x128xf32, #tpu.memory_space<vmem>>, vector<1x16x9xf32>
    %1 = vector.shape_cast %0 : vector<1x16x9xf32> to vector<16x9xf32>
    %c0_i32 = arith.constant 0 : i32
    %2 = arith.cmpi sgt, %arg1, %c0_i32 : i32
    %3 = arith.extui %2 : i1 to i32
    %4 = arith.sitofp %3 : i32 to f32
    %5 = vector.broadcast %4 : f32 to vector<16x9xf32>
    %6 = arith.mulf %1, %5 : vector<16x9xf32>
    %c0_1 = arith.constant 0 : index
    %c0_2 = arith.constant 0 : index
    %c0_3 = arith.constant 0 : index
    %7 = vector.load %arg4[%c0_1, %c0_2, %c0_3] : memref<1x16x128xf32, #tpu.memory_space<vmem>>, vector<1x16x9xf32>
    %8 = vector.shape_cast %7 : vector<1x16x9xf32> to vector<16x9xf32>
    %c3_i32 = arith.constant 3 : i32
    %9 = arith.cmpi slt, %arg1, %c3_i32 : i32
    %10 = arith.extui %9 : i1 to i32
    %11 = arith.sitofp %10 : i32 to f32
    %12 = vector.broadcast %11 : f32 to vector<16x9xf32>
    %13 = arith.mulf %8, %12 : vector<16x9xf32>
    %c0_4 = arith.constant 0 : index
    %c0_5 = arith.constant 0 : index
    %c0_6 = arith.constant 0 : index
    %14 = vector.load %arg2[%c0_4, %c0_5, %c0_6] : memref<1x16x512xf32, #tpu.memory_space<vmem>>, vector<1x16x512xf32>
    %15 = vector.shape_cast %14 : vector<1x16x512xf32> to vector<16x512xf32>
    %16 = tpu.concatenate %6, %15, %13 in 1 : vector<16x9xf32>, vector<16x512xf32>, vector<16x9xf32> -> vector<16x530xf32>
    %c0_7 = arith.constant 0 : index
    %c0_8 = arith.constant 0 : index
    %17 = vector.load %arg5[%c0_7, %c0_8] : memref<16x1xf32, #tpu.memory_space<vmem>>, vector<16x1xf32>
    %c0_9 = arith.constant 0 : index
    %c0_10 = arith.constant 0 : index
    %18 = vector.load %arg6[%c0_9, %c0_10] : memref<16x1xf32, #tpu.memory_space<vmem>>, vector<16x1xf32>
    %19 = vector.broadcast %17 : vector<16x1xf32> to vector<16x530xf32>
    %20 = arith.mulf %19, %16 : vector<16x530xf32>
    %21 = math.sin %20 : vector<16x530xf32>
    %22 = arith.mulf %21, %21 : vector<16x530xf32>
    %23 = vector.broadcast %18 : vector<16x1xf32> to vector<16x530xf32>
    %24 = arith.mulf %23, %22 : vector<16x530xf32>
    %25 = arith.addf %16, %24 : vector<16x530xf32>
    %26 = arith.truncf %25 : vector<16x530xf32> to vector<16x530xbf16>
    %27 = vector.extract_strided_slice %26 {offsets = [0, 0], sizes = [16, 512], strides = [1, 1]} : vector<16x530xbf16> to vector<16x512xbf16>
    %28 = vector.extract_strided_slice %26 {offsets = [0, 3], sizes = [16, 512], strides = [1, 1]} : vector<16x530xbf16> to vector<16x512xbf16>
    %29 = vector.extract_strided_slice %26 {offsets = [0, 6], sizes = [16, 512], strides = [1, 1]} : vector<16x530xbf16> to vector<16x512xbf16>
    %30 = vector.extract_strided_slice %26 {offsets = [0, 9], sizes = [16, 512], strides = [1, 1]} : vector<16x530xbf16> to vector<16x512xbf16>
    %31 = vector.extract_strided_slice %26 {offsets = [0, 12], sizes = [16, 512], strides = [1, 1]} : vector<16x530xbf16> to vector<16x512xbf16>
    %32 = vector.extract_strided_slice %26 {offsets = [0, 15], sizes = [16, 512], strides = [1, 1]} : vector<16x530xbf16> to vector<16x512xbf16>
    %33 = vector.extract_strided_slice %26 {offsets = [0, 18], sizes = [16, 512], strides = [1, 1]} : vector<16x530xbf16> to vector<16x512xbf16>
    %34 = tpu.concatenate %27, %28, %29, %30, %31, %32, %33 in 0 : vector<16x512xbf16>, vector<16x512xbf16>, vector<16x512xbf16>, vector<16x512xbf16>, vector<16x512xbf16>, vector<16x512xbf16>, vector<16x512xbf16> -> vector<112x512xbf16>
    %c0_11 = arith.constant 0 : index
    %c0_12 = arith.constant 0 : index
    %35 = vector.load %arg7[%c0_11, %c0_12] : memref<16x112xbf16, #tpu.memory_space<vmem>>, vector<16x112xbf16>
    %cst = arith.constant dense<0.000000e+00> : vector<16x512xf32>
    %36 = tpu.matmul %35, %34, %cst {dimension_numbers = #tpu.dot_dimension_numbers<[1], [0], [0], [1], [0, 0, 1, 1], [], []>} : vector<16x112xbf16>, vector<112x512xbf16>, vector<16x512xf32> -> vector<16x512xf32>
    %c0_13 = arith.constant 0 : index
    %c0_14 = arith.constant 0 : index
    %37 = vector.load %arg8[%c0_13, %c0_14] : memref<16x1xf32, #tpu.memory_space<vmem>>, vector<16x1xf32>
    %38 = vector.broadcast %37 : vector<16x1xf32> to vector<16x512xf32>
    %39 = arith.addf %36, %38 : vector<16x512xf32>
    %c0_15 = arith.constant 0 : index
    %c0_16 = arith.constant 0 : index
    %40 = vector.load %arg9[%c0_15, %c0_16] : memref<16x1xf32, #tpu.memory_space<vmem>>, vector<16x1xf32>
    %c0_17 = arith.constant 0 : index
    %c0_18 = arith.constant 0 : index
    %41 = vector.load %arg10[%c0_17, %c0_18] : memref<16x1xf32, #tpu.memory_space<vmem>>, vector<16x1xf32>
    %42 = vector.broadcast %40 : vector<16x1xf32> to vector<16x512xf32>
    %43 = arith.mulf %42, %39 : vector<16x512xf32>
    %44 = math.sin %43 : vector<16x512xf32>
    %45 = arith.mulf %44, %44 : vector<16x512xf32>
    %46 = vector.broadcast %41 : vector<16x1xf32> to vector<16x512xf32>
    %47 = arith.mulf %46, %45 : vector<16x512xf32>
    %48 = arith.addf %39, %47 : vector<16x512xf32>
    %49 = arith.truncf %48 : vector<16x512xf32> to vector<16x512xbf16>
    %c0_19 = arith.constant 0 : index
    %c0_20 = arith.constant 0 : index
    %50 = vector.load %arg11[%c0_19, %c0_20] : memref<16x16xbf16, #tpu.memory_space<vmem>>, vector<16x16xbf16>
    %cst_21 = arith.constant dense<0.000000e+00> : vector<16x512xf32>
    %51 = tpu.matmul %50, %49, %cst_21 {dimension_numbers = #tpu.dot_dimension_numbers<[1], [0], [0], [1], [0, 0, 1, 1], [], []>} : vector<16x16xbf16>, vector<16x512xbf16>, vector<16x512xf32> -> vector<16x512xf32>
    %c0_22 = arith.constant 0 : index
    %c0_23 = arith.constant 0 : index
    %52 = vector.load %arg12[%c0_22, %c0_23] : memref<16x1xf32, #tpu.memory_space<vmem>>, vector<16x1xf32>
    %53 = vector.broadcast %52 : vector<16x1xf32> to vector<16x512xf32>
    %54 = arith.addf %51, %53 : vector<16x512xf32>
    %c0_24 = arith.constant 0 : index
    %c0_25 = arith.constant 0 : index
    %c0_26 = arith.constant 0 : index
    %55 = vector.load %arg2[%c0_24, %c0_25, %c0_26] : memref<1x16x512xf32, #tpu.memory_space<vmem>>, vector<1x16x512xf32>
    %56 = vector.shape_cast %55 : vector<1x16x512xf32> to vector<16x512xf32>
    %57 = arith.addf %56, %54 : vector<16x512xf32>
    %c0_27 = arith.constant 0 : index
    %c0_28 = arith.constant 0 : index
    %c0_29 = arith.constant 0 : index
    %58 = vector.load %arg13[%c0_27, %c0_28, %c0_29] : memref<1x16x512xf32, #tpu.memory_space<vmem>>, vector<1x16x512xf32>
    %59 = vector.shape_cast %58 : vector<1x16x512xf32> to vector<16x512xf32>
    %60 = vector.shape_cast %57 : vector<16x512xf32> to vector<1x16x512xf32>
    tpu.vector_store %arg13[%c0_27, %c0_28, %c0_29], %60 {strides = array<i32>} : memref<1x16x512xf32, #tpu.memory_space<vmem>>, vector<1x16x512xf32>,
    return
  }
  func.func @transform_0(%arg0: i32, %arg1: i32) -> (i32, i32, i32) {
    %c0_i32 = arith.constant 0 : i32
    %c0_i32_0 = arith.constant 0 : i32
    return %arg0, %c0_i32, %arg1 : i32, i32, i32
  }
  func.func @transform_1(%arg0: i32, %arg1: i32) -> (i32, i32, i32) {
    %c4_i32 = arith.constant 4 : i32
    %0 = arith.muli %arg1, %c4_i32 : i32
    %c1_i32 = arith.constant 1 : i32
    %1 = arith.subi %0, %c1_i32 : i32
    %c0_i32 = arith.constant 0 : i32
    %2 = arith.maxsi %1, %c0_i32 : i32
    %c0_i32_0 = arith.constant 0 : i32
    %c0_i32_1 = arith.constant 0 : i32
    return %arg0, %c0_i32_0, %2 : i32, i32, i32
  }
  func.func @transform_2(%arg0: i32, %arg1: i32) -> (i32, i32, i32) {
    %c1_i32 = arith.constant 1 : i32
    %0 = arith.addi %arg1, %c1_i32 : i32
    %c4_i32 = arith.constant 4 : i32
    %1 = arith.muli %0, %c4_i32 : i32
    %c15_i32 = arith.constant 15 : i32
    %2 = arith.minsi %1, %c15_i32 : i32
    %c0_i32 = arith.constant 0 : i32
    %c0_i32_0 = arith.constant 0 : i32
    return %arg0, %c0_i32, %2 : i32, i32, i32
  }
  func.func @transform_3(%arg0: i32, %arg1: i32) -> (i32, i32) {
    %c0_i32 = arith.constant 0 : i32
    %c0_i32_0 = arith.constant 0 : i32
    %c0_i32_1 = arith.constant 0 : i32
    return %c0_i32, %c0_i32_0 : i32, i32
  }
  func.func @transform_4(%arg0: i32, %arg1: i32) -> (i32, i32) {
    %c0_i32 = arith.constant 0 : i32
    %c0_i32_0 = arith.constant 0 : i32
    %c0_i32_1 = arith.constant 0 : i32
    return %c0_i32, %c0_i32_0 : i32, i32
  }
  func.func @transform_5(%arg0: i32, %arg1: i32) -> (i32, i32) {
    %c0_i32 = arith.constant 0 : i32
    %c0_i32_0 = arith.constant 0 : i32
    %c0_i32_1 = arith.constant 0 : i32
    return %c0_i32, %c0_i32_0 : i32, i32
  }
  func.func @transform_6(%arg0: i32, %arg1: i32) -> (i32, i32) {
    %c0_i32 = arith.constant 0 : i32
    %c0_i32_0 = arith.constant 0 : i32
    %c0_i32_1 = arith.constant 0 : i32
    return %c0_i32, %c0_i32_0 : i32, i32
  }
  func.func @transform_7(%arg0: i32, %arg1: i32) -> (i32, i32) {
    %c0_i32 = arith.constant 0 : i32
    %c0_i32_0 = arith.constant 0 : i32
    %c0_i32_1 = arith.constant 0 : i32
    return %c0_i32, %c0_i32_0 : i32, i32
  }
  func.func @transform_8(%arg0: i32, %arg1: i32) -> (i32, i32) {
    %c0_i32 = arith.constant 0 : i32
    %c0_i32_0 = arith.constant 0 : i32
    %c0_i32_1 = arith.constant 0 : i32
    return %c0_i32, %c0_i32_0 : i32, i32
  }
  func.func @transform_9(%arg0: i32, %arg1: i32) -> (i32, i32) {
    %c0_i32 = arith.constant 0 : i32
    %c0_i32_0 = arith.constant 0 : i32
    %c0_i32_1 = arith.constant 0 : i32
    return %c0_i32, %c0_i32_0 : i32, i32
  }
  func.func @transform_10(%arg0: i32, %arg1: i32) -> (i32, i32) {
    %c0_i32 = arith.constant 0 : i32
    %c0_i32_0 = arith.constant 0 : i32
    %c0_i32_1 = arith.constant 0 : i32
    return %c0_i32, %c0_i32_0 : i32, i32
  }
  func.func @transform_11(%arg0: i32, %arg1: i32) -> (i32, i32, i32) {
    %c0_i32 = arith.constant 0 : i32
    %c0_i32_0 = arith.constant 0 : i32
    return %arg0, %c0_i32, %arg1 : i32, i32, i32
  }
}

</mosaic_0001>

<llo_original>
// kernel: tpu_custom_call.1
$region0: #{tpu_custom_call.1}
  #allocation0 [shape = 'u32[]', space=smem, size = 0x4, offset = 0x4, fixed_abs, tag = 'smem constant byte address 0x4 - core index']
  #allocation1 [shape = 'u32[144,128]{1,0:T(1,128)}', space=vmem, size = 0x12000, scoped, tag = 'internal scratch']
  %s0 = inlined_call_operand.hbm [shape: f32[2,16,2048], index: 0, kind: input, shape index: {}]
  %s1 = inlined_call_operand.hbm [shape: f32[2,16,2048], index: 1, kind: input, shape index: {}]
  %s2 = inlined_call_operand.hbm [shape: f32[2,16,2048], index: 2, kind: input, shape index: {}]
  %s3 = inlined_call_operand.vmem [shape: f32[16,1], index: 3, kind: input, shape index: {}]
  %s4 = inlined_call_operand.vmem [shape: f32[16,1], index: 4, kind: input, shape index: {}]
  %s5 = inlined_call_operand.vmem [shape: bf16[16,112], index: 5, kind: input, shape index: {}]
  %s6 = inlined_call_operand.vmem [shape: f32[16,1], index: 6, kind: input, shape index: {}]
  %s7 = inlined_call_operand.vmem [shape: f32[16,1], index: 7, kind: input, shape index: {}]
  %s8 = inlined_call_operand.vmem [shape: f32[16,1], index: 8, kind: input, shape index: {}]
  %s9 = inlined_call_operand.vmem [shape: bf16[16,16], index: 9, kind: input, shape index: {}]
  %s10 = inlined_call_operand.vmem [shape: f32[16,1], index: 10, kind: input, shape index: {}]
  %s11 = inlined_call_operand.hbm [shape: f32[2,16,2048], index: 11, kind: output, shape index: {}]
  %s12 = sld [smem:[#allocation0]]
  $region89: #{tpu_custom_call.1} parent=0
    _
  %s14 = ssub.s32 1, %s12
  %s15 = scalar_select 0, %s14, %s12
  $region1: #{tpu_custom_call.1} parent=0
    #allocation2 [shape = 'u8[65536]{0}', space=vmem, size = 0x10000, scoped, tag = 'input window, operand 0']
    #allocation3 [shape = 's32[2]{0}', space=sflag, size = 0x8, scoped, tag = 'scoped memory for tpu_custom_call.1']
    #allocation4 [shape = 's32[2]{0}', space=sflag, size = 0x8, scoped, tag = 'scoped memory for tpu_custom_call.1']
    #allocation5 [shape = 'u8[16384]{0}', space=vmem, size = 0x4000, scoped, tag = 'input window, operand 1']
    #allocation6 [shape = 's32[2]{0}', space=sflag, size = 0x8, scoped, tag = 'scoped memory for tpu_custom_call.1']
    #allocation7 [shape = 'u8[16384]{0}', space=vmem, size = 0x4000, scoped, tag = 'input window, operand 2']
    #allocation8 [shape = 'u8[65536]{0}', space=vmem, size = 0x10000, scoped, tag = 'output window, operand 0']
    %16 = vsyncpa [#allocation3], 0
    %s17 = scalar_lea.sflag [#allocation3], 1
    %18 = vsyncpa %s17, 0
    %19 = vsyncpa [#allocation6], 0
    %s20 = scalar_lea.sflag [#allocation6], 1
    %21 = vsyncpa %s20, 0
    %22 = vsyncpa [#allocation4], 0
    %s23 = scalar_lea.sflag [#allocation4], 1
    %24 = vsyncpa %s23, 0
    loop: start=0, step=1, limit=10
    $region2: #{tpu_custom_call.1} parent=1 // loop_pre_header
      _
    $region3: #{tpu_custom_call.1} parent=1 // loop_header
      %s26 = sphi 0, %s30
      %p27 = scmp.ge.s32.totalorder %s26, 10
      %s33 = sphi 0, %s45
      %s34 = sphi 0, %s41
      %s35 = sphi 0, %s33
      %s36 = sphi 0, %s34
      %s37 = sphi 0, %s35
      %s38 = sphi 0, %s36
      %s50 = sphi 0, %s52
      %s53 = sphi 0, %s50
      %s54 = sphi 0, %s53
      %s70 = sphi 0, %s54
      %s86 = sphi 0, %s88
      %s89 = sphi 0, %s86
      %s90 = sphi 0, %s89
      %s106 = sphi 0, %s90
      %s122 = sphi 0, %s124
      %s125 = sphi 0, %s122
      %s126 = sphi 0, %s125
      %s142 = sphi 0, %s126
      %s146 = sphi 0, %s146
      %s148 = sphi 0, %s146
      %s149 = sphi 0, %s148
      %s163 = sphi 0, %s149
      %s167 = sphi 0, %s167
      %s169 = sphi 0, %s167
      %s170 = sphi 0, %s169
      %s184 = sphi 0, %s170
      %s188 = sphi 0, %s188
      %s190 = sphi 0, %s188
      %s191 = sphi 0, %s190
      %s205 = sphi 0, %s191
      %s209 = sphi 0, %s209
      %s211 = sphi 0, %s209
      %s212 = sphi 0, %s211
      %s226 = sphi 0, %s212
      %s230 = sphi 0, %s230
      %s232 = sphi 0, %s230
      %s233 = sphi 0, %s232
      %s247 = sphi 0, %s233
      %s251 = sphi 0, %s251
      %s253 = sphi 0, %s251
      %s254 = sphi 0, %s253
      %s268 = sphi 0, %s254
      %s272 = sphi 0, %s272
      %s274 = sphi 0, %s272
      %s275 = sphi 0, %s274
      %s289 = sphi 0, %s275
      %s293 = sphi 0, %s293
      %s295 = sphi 0, %s293
      %s296 = sphi 0, %s295
      %s310 = sphi 0, %s296
      %s318 = sphi 0, %s320
      %s321 = sphi 0, %s318
      %s322 = sphi 0, %s321
      %s338 = sphi 0, %s322
    $region4: #{tpu_custom_call.1} parent=1 // loop_header_branch
      %29 = sbr.rel (%p27) target = $region8
    $region5: #{tpu_custom_call.1} parent=1 // loop_body
      %s31 = ssub.s32 %s26, 1
      %s32 = ssub.s32 %s26, 2
      %s39 = sadd.s32 1, %s34
      %p40 = scmp.ge.s32.totalorder %s39, 4
      %s41 = scalar_select %p40, 0, %s39
      %s42 = sadd.s32 1, %s33
      %s43 = scalar_select %p40, %s42, %s33
      %p44 = scmp.ge.s32.totalorder %s43, 2
      %s45 = scalar_select %p44, 0, %s43
      %s46 = ssub.s32 %s33, %s45
      %s47 = ssub.s32 %s34, %s41
      %s48 = sor.u32 %s46, %s47
      %p49 = scmp.eq.s32.totalorder %s48, 0
      %s51 = sadd.s32 %s50, 1
      %s52 = scalar_select %p49, %s50, %s51
      %p55 = pneg %p49
      %p56 = scmp.eq.s32.totalorder %s26, 7
      %p57 = por %p55, %p56
      %p58 = scmp.ne.s32.totalorder %s50, %s53
      %p59 = scmp.eq.s32.totalorder %s26, 0
      %p60 = por %p58, %p59
      %p61 = scmp.ne.s32.totalorder %s50, %s53
      %p62 = scmp.eq.s32.totalorder %s31, 7
      %p63 = por %p61, %p62
      %p64 = scmp.ne.s32.totalorder %s53, %s54
      %p65 = scmp.eq.s32.totalorder %s31, 0
      %p66 = por %p64, %p65
      %p67 = scmp.ne.s32.totalorder %s53, %s54
      %p68 = scmp.eq.s32.totalorder %s32, 7
      %p69 = por %p67, %p68
      %p71 = scmp.ne.s32.totalorder %s54, %s70
      %p72 = scmp.eq.s32.totalorder %s32, 0
      %p73 = por %p71, %p72
      %s74 = smul.u32 %s34, 4
      %s75 = ssub.s32 %s74, 1
      %p76 = scmp.gt.s32.totalorder %s75, 0
      %s77 = scalar_select %p76, %s75, 0
      %s78 = smul.u32 %s41, 4
      %s79 = ssub.s32 %s78, 1
      %p80 = scmp.gt.s32.totalorder %s79, 0
      %s81 = scalar_select %p80, %s79, 0
      %s82 = ssub.s32 %s33, %s45
      %s83 = ssub.s32 %s77, %s81
      %s84 = sor.u32 %s82, %s83
      %p85 = scmp.eq.s32.totalorder %s84, 0
      %s87 = sadd.s32 %s86, 1
      %s88 = scalar_select %p85, %s86, %s87
      %p91 = pneg %p85
      %p92 = scmp.eq.s32.totalorder %s26, 7
      %p93 = por %p91, %p92
      %p94 = scmp.ne.s32.totalorder %s86, %s89
      %p95 = scmp.eq.s32.totalorder %s26, 0
      %p96 = por %p94, %p95
      %p97 = scmp.ne.s32.totalorder %s86, %s89
      %p98 = scmp.eq.s32.totalorder %s31, 7
      %p99 = por %p97, %p98
      %p100 = scmp.ne.s32.totalorder %s89, %s90
      %p101 = scmp.eq.s32.totalorder %s31, 0
      %p102 = por %p100, %p101
      %p103 = scmp.ne.s32.totalorder %s89, %s90
      %p104 = scmp.eq.s32.totalorder %s32, 7
      %p105 = por %p103, %p104
      %p107 = scmp.ne.s32.totalorder %s90, %s106
      %p108 = scmp.eq.s32.totalorder %s32, 0
      %p109 = por %p107, %p108
      %s110 = sadd.s32 %s34, 1
      %s111 = smul.u32 %s110, 4
      %p112 = scmp.lt.s32.totalorder %s111, 15
      %s113 = scalar_select %p112, %s111, 15
      %s114 = sadd.s32 %s41, 1
      %s115 = smul.u32 %s114, 4
      %p116 = scmp.lt.s32.totalorder %s115, 15
      %s117 = scalar_select %p116, %s115, 15
      %s118 = ssub.s32 %s33, %s45
      %s119 = ssub.s32 %s113, %s117
      %s120 = sor.u32 %s118, %s119
      %p121 = scmp.eq.s32.totalorder %s120, 0
      %s123 = sadd.s32 %s122, 1
      %s124 = scalar_select %p121, %s122, %s123
      %p127 = pneg %p121
      %p128 = scmp.eq.s32.totalorder %s26, 7
      %p129 = por %p127, %p128
      %p130 = scmp.ne.s32.totalorder %s122, %s125
      %p131 = scmp.eq.s32.totalorder %s26, 0
      %p132 = por %p130, %p131
      %p133 = scmp.ne.s32.totalorder %s122, %s125
      %p134 = scmp.eq.s32.totalorder %s31, 7
      %p135 = por %p133, %p134
      %p136 = scmp.ne.s32.totalorder %s125, %s126
      %p137 = scmp.eq.s32.totalorder %s31, 0
      %p138 = por %p136, %p137
      %p139 = scmp.ne.s32.totalorder %s125, %s126
      %p140 = scmp.eq.s32.totalorder %s32, 7
      %p141 = por %p139, %p140
      %p143 = scmp.ne.s32.totalorder %s126, %s142
      %p144 = scmp.eq.s32.totalorder %s32, 0
      %p145 = por %p143, %p144
      %s147 = sadd.s32 %s146, 1
      %p150 = scmp.eq.s32.totalorder %s26, 7
      %p151 = scmp.ne.s32.totalorder %s146, %s148
      %p152 = scmp.eq.s32.totalorder %s26, 0
      %p153 = por %p151, %p152
      %p154 = scmp.ne.s32.totalorder %s146, %s148
      %p155 = scmp.eq.s32.totalorder %s31, 7
      %p156 = por %p154, %p155
      %p157 = scmp.ne.s32.totalorder %s148, %s149
      %p158 = scmp.eq.s32.totalorder %s31, 0
      %p159 = por %p157, %p158
      %p160 = scmp.ne.s32.totalorder %s148, %s149
      %p161 = scmp.eq.s32.totalorder %s32, 7
      %p162 = por %p160, %p161
      %p164 = scmp.ne.s32.totalorder %s149, %s163
      %p165 = scmp.eq.s32.totalorder %s32, 0
      %p166 = por %p164, %p165
      %s168 = sadd.s32 %s167, 1
      %p171 = scmp.eq.s32.totalorder %s26, 7
      %p172 = scmp.ne.s32.totalorder %s167, %s169
      %p173 = scmp.eq.s32.totalorder %s26, 0
      %p174 = por %p172, %p173
      %p175 = scmp.ne.s32.totalorder %s167, %s169
      %p176 = scmp.eq.s32.totalorder %s31, 7
      %p177 = por %p175, %p176
      %p178 = scmp.ne.s32.totalorder %s169, %s170
      %p179 = scmp.eq.s32.totalorder %s31, 0
      %p180 = por %p178, %p179
      %p181 = scmp.ne.s32.totalorder %s169, %s170
      %p182 = scmp.eq.s32.totalorder %s32, 7
      %p183 = por %p181, %p182
      %p185 = scmp.ne.s32.totalorder %s170, %s184
      %p186 = scmp.eq.s32.totalorder %s32, 0
      %p187 = por %p185, %p186
      %s189 = sadd.s32 %s188, 1
      %p192 = scmp.eq.s32.totalorder %s26, 7
      %p193 = scmp.ne.s32.totalorder %s188, %s190
      %p194 = scmp.eq.s32.totalorder %s26, 0
      %p195 = por %p193, %p194
      %p196 = scmp.ne.s32.totalorder %s188, %s190
      %p197 = scmp.eq.s32.totalorder %s31, 7
      %p198 = por %p196, %p197
      %p199 = scmp.ne.s32.totalorder %s190, %s191
      %p200 = scmp.eq.s32.totalorder %s31, 0
      %p201 = por %p199, %p200
      %p202 = scmp.ne.s32.totalorder %s190, %s191
      %p203 = scmp.eq.s32.totalorder %s32, 7
      %p204 = por %p202, %p203
      %p206 = scmp.ne.s32.totalorder %s191, %s205
      %p207 = scmp.eq.s32.totalorder %s32, 0
      %p208 = por %p206, %p207
      %s210 = sadd.s32 %s209, 1
      %p213 = scmp.eq.s32.totalorder %s26, 7
      %p214 = scmp.ne.s32.totalorder %s209, %s211
      %p215 = scmp.eq.s32.totalorder %s26, 0
      %p216 = por %p214, %p215
      %p217 = scmp.ne.s32.totalorder %s209, %s211
      %p218 = scmp.eq.s32.totalorder %s31, 7
      %p219 = por %p217, %p218
      %p220 = scmp.ne.s32.totalorder %s211, %s212
      %p221 = scmp.eq.s32.totalorder %s31, 0
      %p222 = por %p220, %p221
      %p223 = scmp.ne.s32.totalorder %s211, %s212
      %p224 = scmp.eq.s32.totalorder %s32, 7
      %p225 = por %p223, %p224
      %p227 = scmp.ne.s32.totalorder %s212, %s226
      %p228 = scmp.eq.s32.totalorder %s32, 0
      %p229 = por %p227, %p228
      %s231 = sadd.s32 %s230, 1
      %p234 = scmp.eq.s32.totalorder %s26, 7
      %p235 = scmp.ne.s32.totalorder %s230, %s232
      %p236 = scmp.eq.s32.totalorder %s26, 0
      %p237 = por %p235, %p236
      %p238 = scmp.ne.s32.totalorder %s230, %s232
      %p239 = scmp.eq.s32.totalorder %s31, 7
      %p240 = por %p238, %p239
      %p241 = scmp.ne.s32.totalorder %s232, %s233
      %p242 = scmp.eq.s32.totalorder %s31, 0
      %p243 = por %p241, %p242
      %p244 = scmp.ne.s32.totalorder %s232, %s233
      %p245 = scmp.eq.s32.totalorder %s32, 7
      %p246 = por %p244, %p245
      %p248 = scmp.ne.s32.totalorder %s233, %s247
      %p249 = scmp.eq.s32.totalorder %s32, 0
      %p250 = por %p248, %p249
      %s252 = sadd.s32 %s251, 1
      %p255 = scmp.eq.s32.totalorder %s26, 7
      %p256 = scmp.ne.s32.totalorder %s251, %s253
      %p257 = scmp.eq.s32.totalorder %s26, 0
      %p258 = por %p256, %p257
      %p259 = scmp.ne.s32.totalorder %s251, %s253
      %p260 = scmp.eq.s32.totalorder %s31, 7
      %p261 = por %p259, %p260
      %p262 = scmp.ne.s32.totalorder %s253, %s254
      %p263 = scmp.eq.s32.totalorder %s31, 0
      %p264 = por %p262, %p263
      %p265 = scmp.ne.s32.totalorder %s253, %s254
      %p266 = scmp.eq.s32.totalorder %s32, 7
      %p267 = por %p265, %p266
      %p269 = scmp.ne.s32.totalorder %s254, %s268
      %p270 = scmp.eq.s32.totalorder %s32, 0
      %p271 = por %p269, %p270
      %s273 = sadd.s32 %s272, 1
      %p276 = scmp.eq.s32.totalorder %s26, 7
      %p277 = scmp.ne.s32.totalorder %s272, %s274
      %p278 = scmp.eq.s32.totalorder %s26, 0
      %p279 = por %p277, %p278
      %p280 = scmp.ne.s32.totalorder %s272, %s274
      %p281 = scmp.eq.s32.totalorder %s31, 7
      %p282 = por %p280, %p281
      %p283 = scmp.ne.s32.totalorder %s274, %s275
      %p284 = scmp.eq.s32.totalorder %s31, 0
      %p285 = por %p283, %p284
      %p286 = scmp.ne.s32.totalorder %s274, %s275
      %p287 = scmp.eq.s32.totalorder %s32, 7
      %p288 = por %p286, %p287
      %p290 = scmp.ne.s32.totalorder %s275, %s289
      %p291 = scmp.eq.s32.totalorder %s32, 0
      %p292 = por %p290, %p291
      %s294 = sadd.s32 %s293, 1
      %p297 = scmp.eq.s32.totalorder %s26, 7
      %p298 = scmp.ne.s32.totalorder %s293, %s295
      %p299 = scmp.eq.s32.totalorder %s26, 0
      %p300 = por %p298, %p299
      %p301 = scmp.ne.s32.totalorder %s293, %s295
      %p302 = scmp.eq.s32.totalorder %s31, 7
      %p303 = por %p301, %p302
      %p304 = scmp.ne.s32.totalorder %s295, %s296
      %p305 = scmp.eq.s32.totalorder %s31, 0
      %p306 = por %p304, %p305
      %p307 = scmp.ne.s32.totalorder %s295, %s296
      %p308 = scmp.eq.s32.totalorder %s32, 7
      %p309 = por %p307, %p308
      %p311 = scmp.ne.s32.totalorder %s296, %s310
      %p312 = scmp.eq.s32.totalorder %s32, 0
      %p313 = por %p311, %p312
      %s314 = ssub.s32 %s33, %s45
      %s315 = ssub.s32 %s34, %s41
      %s316 = sor.u32 %s314, %s315
      %p317 = scmp.eq.s32.totalorder %s316, 0
      %s319 = sadd.s32 %s318, 1
      %s320 = scalar_select %p317, %s318, %s319
      %p323 = pneg %p317
      %p324 = scmp.eq.s32.totalorder %s26, 7
      %p325 = por %p323, %p324
      %p326 = scmp.ne.s32.totalorder %s318, %s321
      %p327 = scmp.eq.s32.totalorder %s26, 0
      %p328 = por %p326, %p327
      %p329 = scmp.ne.s32.totalorder %s318, %s321
      %p330 = scmp.eq.s32.totalorder %s31, 7
      %p331 = por %p329, %p330
      %p332 = scmp.ne.s32.totalorder %s321, %s322
      %p333 = scmp.eq.s32.totalorder %s31, 0
      %p334 = por %p332, %p333
      %p335 = scmp.ne.s32.totalorder %s321, %s322
      %p336 = scmp.eq.s32.totalorder %s32, 7
      %p337 = por %p335, %p336
      %p339 = scmp.ne.s32.totalorder %s322, %s338
      %p340 = scmp.eq.s32.totalorder %s32, 0
      %p341 = por %p339, %p340
      %p342 = scmp.le.s32.totalorder 1, %s26
      %p343 = scmp.lt.s32.totalorder %s26, 9
      %p344 = pnand %p342, %p343
      %p345 = pneg %p344
      // Predicated region
      $region9: #{tpu_custom_call.1} parent=5 // pred_check
        _
      $region10: #{tpu_custom_call.1} parent=5 // pred_check_branch
        %347 = sbr.rel (%p344) target = $region12
      $region11: #{tpu_custom_call.1} parent=5 // pred_region
        %s348 = ssub.s32 %s26, 1
        // Predicated region
        $region13: #{tpu_custom_call.1} parent=11 // pred_check
          %p349 = pneg %p159
        $region14: #{tpu_custom_call.1} parent=11 // pred_check_branch
          %351 = sbr.rel (%p349) target = $region16
        $region15: #{tpu_custom_call.1} parent=11 // pred_region
          _
        $region16: #{tpu_custom_call.1} parent=11 // pred_fallthru
          _
        // Predicated region
        $region17: #{tpu_custom_call.1} parent=11 // pred_check
          %p352 = pneg %p180
        $region18: #{tpu_custom_call.1} parent=11 // pred_check_branch
          %354 = sbr.rel (%p352) target = $region20
        $region19: #{tpu_custom_call.1} parent=11 // pred_region
          _
        $region20: #{tpu_custom_call.1} parent=11 // pred_fallthru
          _
        // Predicated region
        $region21: #{tpu_custom_call.1} parent=11 // pred_check
          %p355 = pneg %p201
        $region22: #{tpu_custom_call.1} parent=11 // pred_check_branch
          %357 = sbr.rel (%p355) target = $region24
        $region23: #{tpu_custom_call.1} parent=11 // pred_region
          _
        $region24: #{tpu_custom_call.1} parent=11 // pred_fallthru
          _
        // Predicated region
        $region25: #{tpu_custom_call.1} parent=11 // pred_check
          %p358 = pneg %p222
        $region26: #{tpu_custom_call.1} parent=11 // pred_check_branch
          %360 = sbr.rel (%p358) target = $region28
        $region27: #{tpu_custom_call.1} parent=11 // pred_region
          _
        $region28: #{tpu_custom_call.1} parent=11 // pred_fallthru
          _
        // Predicated region
        $region29: #{tpu_custom_call.1} parent=11 // pred_check
          %p361 = pneg %p243
        $region30: #{tpu_custom_call.1} parent=11 // pred_check_branch
          %363 = sbr.rel (%p361) target = $region32
        $region31: #{tpu_custom_call.1} parent=11 // pred_region
          _
        $region32: #{tpu_custom_call.1} parent=11 // pred_fallthru
          _
        // Predicated region
        $region33: #{tpu_custom_call.1} parent=11 // pred_check
          %p364 = pneg %p264
        $region34: #{tpu_custom_call.1} parent=11 // pred_check_branch
          %366 = sbr.rel (%p364) target = $region36
        $region35: #{tpu_custom_call.1} parent=11 // pred_region
          _
        $region36: #{tpu_custom_call.1} parent=11 // pred_fallthru
          _
        // Predicated region
        $region37: #{tpu_custom_call.1} parent=11 // pred_check
          %p367 = pneg %p285
        $region38: #{tpu_custom_call.1} parent=11 // pred_check_branch
          %369 = sbr.rel (%p367) target = $region40
        $region39: #{tpu_custom_call.1} parent=11 // pred_region
          _
        $region40: #{tpu_custom_call.1} parent=11 // pred_fallthru
          _
        // Predicated region
        $region41: #{tpu_custom_call.1} parent=11 // pred_check
          %p370 = pneg %p306
        $region42: #{tpu_custom_call.1} parent=11 // pred_check_branch
          %372 = sbr.rel (%p370) target = $region44
        $region43: #{tpu_custom_call.1} parent=11 // pred_region
          _
        $region44: #{tpu_custom_call.1} parent=11 // pred_fallthru
          _
      $region12: #{tpu_custom_call.1} parent=5 // pred_fallthru
        _
      %p373 = scmp.lt.s32.totalorder %s26, 8
      // Predicated region
      $region45: #{tpu_custom_call.1} parent=5 // pred_check
        %p374 = pneg %p373
      $region46: #{tpu_custom_call.1} parent=5 // pred_check_branch
        %376 = sbr.rel (%p374) target = $region48
      $region47: #{tpu_custom_call.1} parent=5 // pred_region
        // Predicated region
        $region49: #{tpu_custom_call.1} parent=47 // pred_check
          %p377 = pneg %p60
        $region50: #{tpu_custom_call.1} parent=47 // pred_check_branch
          %379 = sbr.rel (%p377) target = $region52
        $region51: #{tpu_custom_call.1} parent=47 // pred_region
          %s380 = sand.u32 %s50, 1
          %s381 = scalar_lea.sflag [#allocation3], %s380
          %s382 = sand.u32 %s50, 1
          %s383 = smul.addr %s382, 64
          %s384 = scalar_lea.vmem [#allocation2], %s383
          %s385 = smul.u32 4, %s34
          %s387 = ssub.s32 1024, 1024
          %388 = vsyncadd %s381, %s387
          %s389 = smul.addr %s33, 32
          %s390 = sadd.s32 %s385, %s389
          %s391 = smul.addr %s390, 128
          %s392 = scalar_lea.hbm %s0, %s391
          %s393 = sshll.u32 %s384, 4
          %s394 = int_to_ptr.vmem [resolvable:$true] %s393
          %399 = dma.hbm_to_vmem [thread:$0]  %s392, 1024, %s394, %s381, 2048, 512, 32
        $region52: #{tpu_custom_call.1} parent=47 // pred_fallthru
          _
        // Predicated region
        $region53: #{tpu_custom_call.1} parent=47 // pred_check
          %p400 = pneg %p96
        $region54: #{tpu_custom_call.1} parent=47 // pred_check_branch
          %402 = sbr.rel (%p400) target = $region56
        $region55: #{tpu_custom_call.1} parent=47 // pred_region
          %s403 = sand.u32 %s26, 1
          %s404 = scalar_lea.sflag [#allocation6], %s403
          %s405 = sand.u32 %s86, 1
          %s406 = smul.addr %s405, 16
          %s407 = scalar_lea.vmem [#allocation5], %s406
          %s408 = smul.u32 %s34, 4
          %s409 = ssub.s32 %s408, 1
          %p410 = scmp.gt.s32.totalorder %s409, 0
          %s411 = scalar_select %p410, %s409, 0
          %s413 = ssub.s32 256, 256
          %414 = vsyncadd %s404, %s413
          %s415 = smul.addr %s33, 32
          %s416 = sadd.s32 %s411, %s415
          %s417 = smul.addr %s416, 128
          %s418 = scalar_lea.hbm %s1, %s417
          %s419 = sshll.u32 %s407, 4
          %s420 = int_to_ptr.vmem [resolvable:$true] %s419
          %425 = dma.hbm_to_vmem [thread:$0]  %s418, 256, %s420, %s404, 2048, 128, 8
        $region56: #{tpu_custom_call.1} parent=47 // pred_fallthru
          _
        // Predicated region
        $region57: #{tpu_custom_call.1} parent=47 // pred_check
          %p426 = pneg %p132
        $region58: #{tpu_custom_call.1} parent=47 // pred_check_branch
          %428 = sbr.rel (%p426) target = $region60
        $region59: #{tpu_custom_call.1} parent=47 // pred_region
          %s429 = sand.u32 %s26, 1
          %s430 = scalar_lea.sflag [#allocation6], %s429
          %s431 = sand.u32 %s122, 1
          %s432 = smul.addr %s431, 16
          %s433 = scalar_lea.vmem [#allocation7], %s432
          %s434 = sadd.s32 %s34, 1
          %s435 = smul.u32 %s434, 4
          %p436 = scmp.lt.s32.totalorder %s435, 15
          %s437 = scalar_select %p436, %s435, 15
          %s439 = ssub.s32 256, 256
          %440 = vsyncadd %s430, %s439
          %s441 = smul.addr %s33, 32
          %s442 = sadd.s32 %s437, %s441
          %s443 = smul.addr %s442, 128
          %s444 = scalar_lea.hbm %s2, %s443
          %s445 = sshll.u32 %s433, 4
          %s446 = int_to_ptr.vmem [resolvable:$true] %s445
          %451 = dma.hbm_to_vmem [thread:$0]  %s444, 256, %s446, %s430, 2048, 128, 8
        $region60: #{tpu_custom_call.1} parent=47 // pred_fallthru
          _
      $region48: #{tpu_custom_call.1} parent=5 // pred_fallthru
        _
      %p452 = scmp.le.s32.totalorder 1, %s26
      %p453 = scmp.lt.s32.totalorder %s26, 9
      %p454 = pnand %p452, %p453
      %p455 = pneg %p454
      // Predicated region
      $region61: #{tpu_custom_call.1} parent=5 // pred_check
        _
      $region62: #{tpu_custom_call.1} parent=5 // pred_check_branch
        %457 = sbr.rel (%p454) target = $region64
      $region63: #{tpu_custom_call.1} parent=5 // pred_region
        %s458 = ssub.s32 %s26, 1
        %s459 = sand.u32 %s53, 1
        %s460 = scalar_lea.sflag [#allocation3], %s459
        %s461 = sand.u32 %s53, 1
        %s462 = smul.addr %s461, 64
        %s463 = scalar_lea.vmem [#allocation2], %s462
        // Predicated region
        $region65: #{tpu_custom_call.1} parent=63 // pred_check
          %p464 = pneg %p66
        $region66: #{tpu_custom_call.1} parent=63 // pred_check_branch
          %466 = sbr.rel (%p464) target = $region68
        $region67: #{tpu_custom_call.1} parent=63 // pred_region
          %467 = dma.done %s460, 1024
        $region68: #{tpu_custom_call.1} parent=63 // pred_fallthru
          _
        %s468 = sand.u32 %s31, 1
        %s469 = scalar_lea.sflag [#allocation6], %s468
        %s470 = sand.u32 %s89, 1
        %s471 = smul.addr %s470, 16
        %s472 = scalar_lea.vmem [#allocation5], %s471
        // Predicated region
        $region69: #{tpu_custom_call.1} parent=63 // pred_check
          %p473 = pneg %p102
        $region70: #{tpu_custom_call.1} parent=63 // pred_check_branch
          %475 = sbr.rel (%p473) target = $region72
        $region71: #{tpu_custom_call.1} parent=63 // pred_region
          %476 = dma.done %s469, 256
        $region72: #{tpu_custom_call.1} parent=63 // pred_fallthru
          _
        %s477 = sand.u32 %s31, 1
        %s478 = scalar_lea.sflag [#allocation6], %s477
        %s479 = sand.u32 %s125, 1
        %s480 = smul.addr %s479, 16
        %s481 = scalar_lea.vmem [#allocation7], %s480
        // Predicated region
        $region73: #{tpu_custom_call.1} parent=63 // pred_check
          %p482 = pneg %p138
        $region74: #{tpu_custom_call.1} parent=63 // pred_check_branch
          %484 = sbr.rel (%p482) target = $region76
        $region75: #{tpu_custom_call.1} parent=63 // pred_region
          %485 = dma.done %s478, 256
        $region76: #{tpu_custom_call.1} parent=63 // pred_fallthru
          _
        %s486 = sand.u32 %s53, 1
        %s487 = scalar_lea.sflag [#allocation3], %s486
        %s488 = sand.u32 %s53, 1
        %s489 = smul.addr %s488, 64
        %s490 = scalar_lea.vmem [#allocation2], %s489
        %p491 = pneg %p66
        %p492 = pneg %p63
        %s493 = sand.u32 %s31, 1
        %s494 = scalar_lea.sflag [#allocation6], %s493
        %s495 = sand.u32 %s89, 1
        %s496 = smul.addr %s495, 16
        %s497 = scalar_lea.vmem [#allocation5], %s496
        %p498 = pneg %p102
        %p499 = pneg %p99
        %s500 = sand.u32 %s31, 1
        %s501 = scalar_lea.sflag [#allocation6], %s500
        %s502 = sand.u32 %s125, 1
        %s503 = smul.addr %s502, 16
        %s504 = scalar_lea.vmem [#allocation7], %s503
        %p505 = pneg %p138
        %p506 = pneg %p135
        %p507 = pneg %p159
        %p508 = pneg %p156
        %p509 = pneg %p180
        %p510 = pneg %p177
        %p511 = pneg %p201
        %p512 = pneg %p198
        %p513 = pneg %p222
        %p514 = pneg %p219
        %p515 = pneg %p243
        %p516 = pneg %p240
        %p517 = pneg %p264
        %p518 = pneg %p261
        %p519 = pneg %p285
        %p520 = pneg %p282
        %p521 = pneg %p306
        %p522 = pneg %p303
        %p523 = pneg %p334
        %p524 = pneg %p331
        %s525 = sand.u32 %s321, 1
        %s526 = scalar_lea.sflag [#allocation4], %s525
        %s527 = sand.u32 %s321, 1
        %s528 = smul.addr %s527, 64
        %s529 = scalar_lea.vmem [#allocation8], %s528
        %s530 = smul.u32 4, %s36
        %s531 = smul.u32 %s36, 4
        %s532 = ssub.s32 %s531, 1
        %p533 = scmp.gt.s32.totalorder %s532, 0
        %s534 = scalar_select %p533, %s532, 0
        %s535 = sadd.s32 %s36, 1
        %s536 = smul.u32 %s535, 4
        %p537 = scmp.lt.s32.totalorder %s536, 15
        %s538 = scalar_select %p537, %s536, 15
        %s539 = smul.u32 4, %s36
        %v541 = vld [vmem:[%s472] sm:$0xff]
        %v542 = vld [vmem:[%s472 + $0x8] sm:$0xff]
        %p543 = scmp.gt.s32.totalorder %s36, 0
        %s544 = scalar_select %p543, 1, 0
        %s545 = scvt.s32.f32 %s544
        %v546 = vstv %s545
        %v547 = vmul.f32 %v541, %v546
        %v548 = vmul.f32 %v542, %v546
        %v549 = vld [vmem:[%s481] sm:$0xff]
        %v550 = vld [vmem:[%s481 + $0x8] sm:$0xff]
        %p551 = scmp.lt.s32.totalorder %s36, 3
        %s552 = scalar_select %p551, 1, 0
        %s553 = scvt.s32.f32 %s552
        %v554 = vstv %s553
        %v555 = vmul.f32 %v549, %v554
        %v556 = vmul.f32 %v550, %v554
        %v557 = vld [vmem:[%s463] sm:$0xff]
        %v558 = vld [vmem:[%s463 + $0x8] sm:$0xff]
        %v559 = vld [vmem:[%s463 + $0x10] sm:$0xff]
        %v560 = vld [vmem:[%s463 + $0x18] sm:$0xff]
        %v561 = vld [vmem:[%s463 + $0x20] sm:$0xff]
        %v562 = vld [vmem:[%s463 + $0x28] sm:$0xff]
        %v563 = vld [vmem:[%s463 + $0x30] sm:$0xff]
        %v564 = vld [vmem:[%s463 + $0x38] sm:$0xff]
        %567 = vrot.lane.b32.xlu0 %v547, 9
        %v568 = vpop.permute.xlu0 %567
        %569 = vrot.lane.b32.xlu0 %v548, 9
        %v570 = vpop.permute.xlu0 %569
        %581 = vrot.lane.b32.xlu0 %v557, 9
        %v582 = vpop.permute.xlu0 %581
        %583 = vrot.lane.b32.xlu0 %v558, 9
        %v584 = vpop.permute.xlu0 %583
        %585 = vrot.lane.b32.xlu0 %v559, 9
        %v586 = vpop.permute.xlu0 %585
        %587 = vrot.lane.b32.xlu0 %v560, 9
        %v588 = vpop.permute.xlu0 %587
        %589 = vrot.lane.b32.xlu0 %v561, 9
        %v590 = vpop.permute.xlu0 %589
        %591 = vrot.lane.b32.xlu0 %v562, 9
        %v592 = vpop.permute.xlu0 %591
        %593 = vrot.lane.b32.xlu0 %v563, 9
        %v594 = vpop.permute.xlu0 %593
        %595 = vrot.lane.b32.xlu0 %v564, 9
        %v596 = vpop.permute.xlu0 %595
        %vm597 = vcmask 72704
        %v598 = vsel %vm597, %v582, %v584
        %v599 = vsel %vm597, %v584, %v586
        %v600 = vsel %vm597, %v586, %v588
        %v601 = vsel %vm597, %v590, %v592
        %v602 = vsel %vm597, %v592, %v594
        %v603 = vsel %vm597, %v594, %v596
        %616 = vrot.lane.b32.xlu0 %v555, 9
        %v617 = vpop.permute.xlu0 %616
        %618 = vrot.lane.b32.xlu0 %v556, 9
        %v619 = vpop.permute.xlu0 %618
        %v622 = vsel %vm597, %v568, %v582
        %v623 = vsel %vm597, %v570, %v590
        %v624 = vsel %vm597, %v588, %v617
        %v625 = vsel %vm597, %v596, %v619
        %v626 = vld [vmem:[%s3] sm:$0xff]
        %v627 = vld [vmem:[%s3 + $0x8] sm:$0xff]
        %v628 = vld [vmem:[%s4] sm:$0xff]
        %v629 = vld [vmem:[%s4 + $0x8] sm:$0xff]
        %631 = vset.pattern.permute.xlu0 0
        %632 = vperm.xlu0 %631, %v626
        %v633 = vpop.permute.xlu0 %632
        %636 = vset.pattern.permute.xlu0 0
        %637 = vperm.xlu0 %636, %v627
        %v638 = vpop.permute.xlu0 %637
        %v640 = vmul.f32 %v633, %v622
        %v641 = vmul.f32 %v633, %v598
        %v642 = vmul.f32 %v633, %v599
        %v643 = vmul.f32 %v633, %v600
        %v644 = vmul.f32 %v633, %v624
        %v645 = vmul.f32 %v638, %v623
        %v646 = vmul.f32 %v638, %v601
        %v647 = vmul.f32 %v638, %v602
        %v648 = vmul.f32 %v638, %v603
        %v649 = vmul.f32 %v638, %v625
        %v650 = vand.u32 2147483647, %v640
        %vm651 = vcmp.le.f32.partialorder %v650, 0.7853982
        %vm652 = vcmp.lt.s32.totalorder %v640, 0
        %v653 = vand.u32 %v640, 2139095040
        %v654 = vshrl.u32 %v653, 23
        %v655 = vsub.s32 %v654, 127
        %v656 = vand.u32 2147483647, %v640
        %v657 = vand.u32 %v656, 8388607
        %v658 = vor.u32 %v657, 8388608
        %v659 = vsub.s32 0, %v658
        %v660 = vadd.s32 %v655, 1
        %vm661 = vcmp.gt.s32.totalorder %v660, 0
        %v662 = vsel %vm661, %v660, 0
        %v663 = vshrl.u32 %v662, 5
        %v664 = vand.u32 %v662, 31
        %v665 = vsub.s32 32, %v664
        %v666 = vshrl.u32 683565275, %v665
        %v667 = vshll.u32 683565275, %v664
        %v668 = vshrl.u32 2475754826, %v665
        %v669 = vor.u32 %v667, %v668
        %v670 = vshll.u32 2475754826, %v664
        %v671 = vshrl.u32 2131351028, %v665
        %v672 = vor.u32 %v670, %v671
        %v673 = vshll.u32 2131351028, %v664
        %v674 = vshrl.u32 2102212464, %v665
        %v675 = vor.u32 %v673, %v674
        %v676 = vshll.u32 2102212464, %v664
        %v677 = vshrl.u32 920167782, %v665
        %v678 = vor.u32 %v676, %v677
        %v679 = vshll.u32 920167782, %v664
        %v680 = vshrl.u32 1326507024, %v665
        %v681 = vor.u32 %v679, %v680
        %vm682 = vcmp.lt.s32.totalorder %v663, 1
        %vm683 = vcmp.lt.s32.totalorder %v663, 2
        %vm684 = vcmp.lt.s32.totalorder %v663, 3
        %vm685 = vcmp.lt.s32.totalorder %v663, 4
        %v686 = vsel %vm682, %v666, %v669
        %v687 = vsel %vm685, %v675, 2102212464
        %v688 = vsel %vm684, %v672, %v687
        %v689 = vsel %vm683, %v686, %v688
        %v690 = vsel %vm682, %v669, %v672
        %v691 = vsel %vm685, %v678, 920167782
        %v692 = vsel %vm684, %v675, %v691
        %v693 = vsel %vm683, %v690, %v692
        %v694 = vsel %vm682, %v672, %v675
        %v695 = vsel %vm685, %v681, 1326507024
        %v696 = vsel %vm684, %v678, %v695
        %v697 = vsel %vm683, %v694, %v696
        %v698 = vshll.u32 %v658, 8
        %v699 = vmul.u32.u64.compose %v698, %v697
        %v700 = vextract.low.u32 %v699
        %v701 = vextract.high.u32 %v699
        %v702 = vmul.u32.u64.compose %v698, %v693
        %v703 = vextract.low.u32 %v702
        %v704 = vextract.high.u32 %v702
        %v705 = vmul.u32 %v698, %v689
        %v706 = vadd.s32 %v701, %v703
        %vm707 = vc.u32 %v701, %v703
        %v708 = vadd.s32 %v704, 1
        %v709 = vsel %vm707, %v708, %v704
        %v710 = vadd.s32 %v705, %v709
        %v711 = vadd.s32 %v710, 536870912
        %v712 = vshrl.u32 %v711, 30
        %v713 = vshll.u32 %v712, 30
        %v714 = vsub.s32 %v710, %v713
        %vm715 = vcmp.lt.s32.totalorder %v714, 0
        %v716 = vsub.s32 0, %v714
        %v717 = vsel %vm715, %v716, %v714
        %v718 = vclz %v717
        %v719 = vsub.s32 %v718, 2
        %vm720 = vcmp.gt.s32.totalorder 0, %v719
        %v721 = vsel %vm720, 0, %v719
        %v722 = vsub.s32 32, %v721
        %v723 = vshll.u32 %v714, %v721
        %v724 = vshrl.u32 %v706, %v722
        %v725 = vor.u32 %v723, %v724
        %v726 = vsub.s32 4294967266, %v721
        %v727 = vadd.s32 %v726, 127
        %v728 = vshll.u32 %v727, 23
        %v729 = vor.u32 4788187, %v728
        %v730 = vand.u32 2147483647, %v729
        %v732 = vcvt.s32.f32 %v725
        %v733 = vmul.f32 %v732, %v730
        %v734 = vxor.u32 %v733, 2147483648
        %v735 = vsel %vm652, %v734, %v733
        %v736 = vsub.s32 4, %v712
        %v737 = vsel %vm652, %v736, %v712
        %v738 = vsel %vm651, %v640, %v735
        %v739 = vsel %vm651, 0, %v737
        %v740 = vcosq.f32.pop %v738
        %v741 = vsinq.f32.pop %v738
        %vm742 = vweird.f32 %v640
        %v743 = vadd.s32 %v739, 3
        %v744 = vand.u32 %v743, 3
        %vm745 = vcmp.lt.s32.totalorder %v744, 2
        %vm746 = vcmp.eq.s32.totalorder %v744, 0
        %v747 = vxor.u32 %v741, 2147483648
        %v748 = vsel %vm746, %v740, %v747
        %vm749 = vcmp.eq.s32.totalorder %v744, 2
        %v750 = vxor.u32 %v740, 2147483648
        %v751 = vsel %vm749, %v750, %v741
        %v752 = vsel %vm745, %v748, %v751
        %v753 = vsel %vm742, nan, %v752
        %v754 = vand.u32 2147483647, %v641
        %vm755 = vcmp.le.f32.partialorder %v754, 0.7853982
        %vm756 = vcmp.lt.s32.totalorder %v641, 0
        %v757 = vand.u32 %v641, 2139095040
        %v758 = vshrl.u32 %v757, 23
        %v759 = vsub.s32 %v758, 127
        %v760 = vand.u32 2147483647, %v641
        %v761 = vand.u32 %v760, 8388607
        %v762 = vor.u32 %v761, 8388608
        %v763 = vsub.s32 0, %v762
        %v764 = vadd.s32 %v759, 1
        %vm765 = vcmp.gt.s32.totalorder %v764, 0
        %v766 = vsel %vm765, %v764, 0
        %v767 = vshrl.u32 %v766, 5
        %v768 = vand.u32 %v766, 31
        %v769 = vsub.s32 32, %v768
        %v770 = vshrl.u32 683565275, %v769
        %v771 = vshll.u32 683565275, %v768
        %v772 = vshrl.u32 2475754826, %v769
        %v773 = vor.u32 %v771, %v772
        %v774 = vshll.u32 2475754826, %v768
        %v775 = vshrl.u32 2131351028, %v769
        %v776 = vor.u32 %v774, %v775
        %v777 = vshll.u32 2131351028, %v768
        %v778 = vshrl.u32 2102212464, %v769
        %v779 = vor.u32 %v777, %v778
        %v780 = vshll.u32 2102212464, %v768
        %v781 = vshrl.u32 920167782, %v769
        %v782 = vor.u32 %v780, %v781
        %v783 = vshll.u32 920167782, %v768
        %v784 = vshrl.u32 1326507024, %v769
        %v785 = vor.u32 %v783, %v784
        %vm786 = vcmp.lt.s32.totalorder %v767, 1
        %vm787 = vcmp.lt.s32.totalorder %v767, 2
        %vm788 = vcmp.lt.s32.totalorder %v767, 3
        %vm789 = vcmp.lt.s32.totalorder %v767, 4
        %v790 = vsel %vm786, %v770, %v773
        %v791 = vsel %vm789, %v779, 2102212464
        %v792 = vsel %vm788, %v776, %v791
        %v793 = vsel %vm787, %v790, %v792
        %v794 = vsel %vm786, %v773, %v776
        %v795 = vsel %vm789, %v782, 920167782
        %v796 = vsel %vm788, %v779, %v795
        %v797 = vsel %vm787, %v794, %v796
        %v798 = vsel %vm786, %v776, %v779
        %v799 = vsel %vm789, %v785, 1326507024
        %v800 = vsel %vm788, %v782, %v799
        %v801 = vsel %vm787, %v798, %v800
        %v802 = vshll.u32 %v762, 8
        %v803 = vmul.u32.u64.compose %v802, %v801
        %v804 = vextract.low.u32 %v803
        %v805 = vextract.high.u32 %v803
        %v806 = vmul.u32.u64.compose %v802, %v797
        %v807 = vextract.low.u32 %v806
        %v808 = vextract.high.u32 %v806
        %v809 = vmul.u32 %v802, %v793
        %v810 = vadd.s32 %v805, %v807
        %vm811 = vc.u32 %v805, %v807
        %v812 = vadd.s32 %v808, 1
        %v813 = vsel %vm811, %v812, %v808
        %v814 = vadd.s32 %v809, %v813
        %v815 = vadd.s32 %v814, 536870912
        %v816 = vshrl.u32 %v815, 30
        %v817 = vshll.u32 %v816, 30
        %v818 = vsub.s32 %v814, %v817
        %vm819 = vcmp.lt.s32.totalorder %v818, 0
        %v820 = vsub.s32 0, %v818
        %v821 = vsel %vm819, %v820, %v818
        %v822 = vclz %v821
        %v823 = vsub.s32 %v822, 2
        %vm824 = vcmp.gt.s32.totalorder 0, %v823
        %v825 = vsel %vm824, 0, %v823
        %v826 = vsub.s32 32, %v825
        %v827 = vshll.u32 %v818, %v825
        %v828 = vshrl.u32 %v810, %v826
        %v829 = vor.u32 %v827, %v828
        %v830 = vsub.s32 4294967266, %v825
        %v831 = vadd.s32 %v830, 127
        %v832 = vshll.u32 %v831, 23
        %v833 = vor.u32 4788187, %v832
        %v834 = vand.u32 2147483647, %v833
        %v836 = vcvt.s32.f32 %v829
        %v837 = vmul.f32 %v836, %v834
        %v838 = vxor.u32 %v837, 2147483648
        %v839 = vsel %vm756, %v838, %v837
        %v840 = vsub.s32 4, %v816
        %v841 = vsel %vm756, %v840, %v816
        %v842 = vsel %vm755, %v641, %v839
        %v843 = vsel %vm755, 0, %v841
        %v844 = vcosq.f32.pop %v842
        %v845 = vsinq.f32.pop %v842
        %vm846 = vweird.f32 %v641
        %v847 = vadd.s32 %v843, 3
        %v848 = vand.u32 %v847, 3
        %vm849 = vcmp.lt.s32.totalorder %v848, 2
        %vm850 = vcmp.eq.s32.totalorder %v848, 0
        %v851 = vxor.u32 %v845, 2147483648
        %v852 = vsel %vm850, %v844, %v851
        %vm853 = vcmp.eq.s32.totalorder %v848, 2
        %v854 = vxor.u32 %v844, 2147483648
        %v855 = vsel %vm853, %v854, %v845
        %v856 = vsel %vm849, %v852, %v855
        %v857 = vsel %vm846, nan, %v856
        %v858 = vand.u32 2147483647, %v642
        %vm859 = vcmp.le.f32.partialorder %v858, 0.7853982
        %vm860 = vcmp.lt.s32.totalorder %v642, 0
        %v861 = vand.u32 %v642, 2139095040
        %v862 = vshrl.u32 %v861, 23
        %v863 = vsub.s32 %v862, 127
        %v864 = vand.u32 2147483647, %v642
        %v865 = vand.u32 %v864, 8388607
        %v866 = vor.u32 %v865, 8388608
        %v867 = vsub.s32 0, %v866
        %v868 = vadd.s32 %v863, 1
        %vm869 = vcmp.gt.s32.totalorder %v868, 0
        %v870 = vsel %vm869, %v868, 0
        %v871 = vshrl.u32 %v870, 5
        %v872 = vand.u32 %v870, 31
        %v873 = vsub.s32 32, %v872
        %v874 = vshrl.u32 683565275, %v873
        %v875 = vshll.u32 683565275, %v872
        %v876 = vshrl.u32 2475754826, %v873
        %v877 = vor.u32 %v875, %v876
        %v878 = vshll.u32 2475754826, %v872
        %v879 = vshrl.u32 2131351028, %v873
        %v880 = vor.u32 %v878, %v879
        %v881 = vshll.u32 2131351028, %v872
        %v882 = vshrl.u32 2102212464, %v873
        %v883 = vor.u32 %v881, %v882
        %v884 = vshll.u32 2102212464, %v872
        %v885 = vshrl.u32 920167782, %v873
        %v886 = vor.u32 %v884, %v885
        %v887 = vshll.u32 920167782, %v872
        %v888 = vshrl.u32 1326507024, %v873
        %v889 = vor.u32 %v887, %v888
        %vm890 = vcmp.lt.s32.totalorder %v871, 1
        %vm891 = vcmp.lt.s32.totalorder %v871, 2
        %vm892 = vcmp.lt.s32.totalorder %v871, 3
        %vm893 = vcmp.lt.s32.totalorder %v871, 4
        %v894 = vsel %vm890, %v874, %v877
        %v895 = vsel %vm893, %v883, 2102212464
        %v896 = vsel %vm892, %v880, %v895
        %v897 = vsel %vm891, %v894, %v896
        %v898 = vsel %vm890, %v877, %v880
        %v899 = vsel %vm893, %v886, 920167782
        %v900 = vsel %vm892, %v883, %v899
        %v901 = vsel %vm891, %v898, %v900
        %v902 = vsel %vm890, %v880, %v883
        %v903 = vsel %vm893, %v889, 1326507024
        %v904 = vsel %vm892, %v886, %v903
        %v905 = vsel %vm891, %v902, %v904
        %v906 = vshll.u32 %v866, 8
        %v907 = vmul.u32.u64.compose %v906, %v905
        %v908 = vextract.low.u32 %v907
        %v909 = vextract.high.u32 %v907
        %v910 = vmul.u32.u64.compose %v906, %v901
        %v911 = vextract.low.u32 %v910
        %v912 = vextract.high.u32 %v910
        %v913 = vmul.u32 %v906, %v897
        %v914 = vadd.s32 %v909, %v911
        %vm915 = vc.u32 %v909, %v911
        %v916 = vadd.s32 %v912, 1
        %v917 = vsel %vm915, %v916, %v912
        %v918 = vadd.s32 %v913, %v917
        %v919 = vadd.s32 %v918, 536870912
        %v920 = vshrl.u32 %v919, 30
        %v921 = vshll.u32 %v920, 30
        %v922 = vsub.s32 %v918, %v921
        %vm923 = vcmp.lt.s32.totalorder %v922, 0
        %v924 = vsub.s32 0, %v922
        %v925 = vsel %vm923, %v924, %v922
        %v926 = vclz %v925
        %v927 = vsub.s32 %v926, 2
        %vm928 = vcmp.gt.s32.totalorder 0, %v927
        %v929 = vsel %vm928, 0, %v927
        %v930 = vsub.s32 32, %v929
        %v931 = vshll.u32 %v922, %v929
        %v932 = vshrl.u32 %v914, %v930
        %v933 = vor.u32 %v931, %v932
        %v934 = vsub.s32 4294967266, %v929
        %v935 = vadd.s32 %v934, 127
        %v936 = vshll.u32 %v935, 23
        %v937 = vor.u32 4788187, %v936
        %v938 = vand.u32 2147483647, %v937
        %v940 = vcvt.s32.f32 %v933
        %v941 = vmul.f32 %v940, %v938
        %v942 = vxor.u32 %v941, 2147483648
        %v943 = vsel %vm860, %v942, %v941
        %v944 = vsub.s32 4, %v920
        %v945 = vsel %vm860, %v944, %v920
        %v946 = vsel %vm859, %v642, %v943
        %v947 = vsel %vm859, 0, %v945
        %v948 = vcosq.f32.pop %v946
        %v949 = vsinq.f32.pop %v946
        %vm950 = vweird.f32 %v642
        %v951 = vadd.s32 %v947, 3
        %v952 = vand.u32 %v951, 3
        %vm953 = vcmp.lt.s32.totalorder %v952, 2
        %vm954 = vcmp.eq.s32.totalorder %v952, 0
        %v955 = vxor.u32 %v949, 2147483648
        %v956 = vsel %vm954, %v948, %v955
        %vm957 = vcmp.eq.s32.totalorder %v952, 2
        %v958 = vxor.u32 %v948, 2147483648
        %v959 = vsel %vm957, %v958, %v949
        %v960 = vsel %vm953, %v956, %v959
        %v961 = vsel %vm950, nan, %v960
        %v962 = vand.u32 2147483647, %v643
        %vm963 = vcmp.le.f32.partialorder %v962, 0.7853982
        %vm964 = vcmp.lt.s32.totalorder %v643, 0
        %v965 = vand.u32 %v643, 2139095040
        %v966 = vshrl.u32 %v965, 23
        %v967 = vsub.s32 %v966, 127
        %v968 = vand.u32 2147483647, %v643
        %v969 = vand.u32 %v968, 8388607
        %v970 = vor.u32 %v969, 8388608
        %v971 = vsub.s32 0, %v970
        %v972 = vadd.s32 %v967, 1
        %vm973 = vcmp.gt.s32.totalorder %v972, 0
        %v974 = vsel %vm973, %v972, 0
        %v975 = vshrl.u32 %v974, 5
        %v976 = vand.u32 %v974, 31
        %v977 = vsub.s32 32, %v976
        %v978 = vshrl.u32 683565275, %v977
        %v979 = vshll.u32 683565275, %v976
        %v980 = vshrl.u32 2475754826, %v977
        %v981 = vor.u32 %v979, %v980
        %v982 = vshll.u32 2475754826, %v976
        %v983 = vshrl.u32 2131351028, %v977
        %v984 = vor.u32 %v982, %v983
        %v985 = vshll.u32 2131351028, %v976
        %v986 = vshrl.u32 2102212464, %v977
        %v987 = vor.u32 %v985, %v986
        %v988 = vshll.u32 2102212464, %v976
        %v989 = vshrl.u32 920167782, %v977
        %v990 = vor.u32 %v988, %v989
        %v991 = vshll.u32 920167782, %v976
        %v992 = vshrl.u32 1326507024, %v977
        %v993 = vor.u32 %v991, %v992
        %vm994 = vcmp.lt.s32.totalorder %v975, 1
        %vm995 = vcmp.lt.s32.totalorder %v975, 2
        %vm996 = vcmp.lt.s32.totalorder %v975, 3
        %vm997 = vcmp.lt.s32.totalorder %v975, 4
        %v998 = vsel %vm994, %v978, %v981
        %v999 = vsel %vm997, %v987, 2102212464
        %v1000 = vsel %vm996, %v984, %v999
        %v1001 = vsel %vm995, %v998, %v1000
        %v1002 = vsel %vm994, %v981, %v984
        %v1003 = vsel %vm997, %v990, 920167782
        %v1004 = vsel %vm996, %v987, %v1003
        %v1005 = vsel %vm995, %v1002, %v1004
        %v1006 = vsel %vm994, %v984, %v987
        %v1007 = vsel %vm997, %v993, 1326507024
        %v1008 = vsel %vm996, %v990, %v1007
        %v1009 = vsel %vm995, %v1006, %v1008
        %v1010 = vshll.u32 %v970, 8
        %v1011 = vmul.u32.u64.compose %v1010, %v1009
        %v1012 = vextract.low.u32 %v1011
        %v1013 = vextract.high.u32 %v1011
        %v1014 = vmul.u32.u64.compose %v1010, %v1005
        %v1015 = vextract.low.u32 %v1014
        %v1016 = vextract.high.u32 %v1014
        %v1017 = vmul.u32 %v1010, %v1001
        %v1018 = vadd.s32 %v1013, %v1015
        %vm1019 = vc.u32 %v1013, %v1015
        %v1020 = vadd.s32 %v1016, 1
        %v1021 = vsel %vm1019, %v1020, %v1016
        %v1022 = vadd.s32 %v1017, %v1021
        %v1023 = vadd.s32 %v1022, 536870912
        %v1024 = vshrl.u32 %v1023, 30
        %v1025 = vshll.u32 %v1024, 30
        %v1026 = vsub.s32 %v1022, %v1025
        %vm1027 = vcmp.lt.s32.totalorder %v1026, 0
        %v1028 = vsub.s32 0, %v1026
        %v1029 = vsel %vm1027, %v1028, %v1026
        %v1030 = vclz %v1029
        %v1031 = vsub.s32 %v1030, 2
        %vm1032 = vcmp.gt.s32.totalorder 0, %v1031
        %v1033 = vsel %vm1032, 0, %v1031
        %v1034 = vsub.s32 32, %v1033
        %v1035 = vshll.u32 %v1026, %v1033
        %v1036 = vshrl.u32 %v1018, %v1034
        %v1037 = vor.u32 %v1035, %v1036
        %v1038 = vsub.s32 4294967266, %v1033
        %v1039 = vadd.s32 %v1038, 127
        %v1040 = vshll.u32 %v1039, 23
        %v1041 = vor.u32 4788187, %v1040
        %v1042 = vand.u32 2147483647, %v1041
        %v1044 = vcvt.s32.f32 %v1037
        %v1045 = vmul.f32 %v1044, %v1042
        %v1046 = vxor.u32 %v1045, 2147483648
        %v1047 = vsel %vm964, %v1046, %v1045
        %v1048 = vsub.s32 4, %v1024
        %v1049 = vsel %vm964, %v1048, %v1024
        %v1050 = vsel %vm963, %v643, %v1047
        %v1051 = vsel %vm963, 0, %v1049
        %v1052 = vcosq.f32.pop %v1050
        %v1053 = vsinq.f32.pop %v1050
        %vm1054 = vweird.f32 %v643
        %v1055 = vadd.s32 %v1051, 3
        %v1056 = vand.u32 %v1055, 3
        %vm1057 = vcmp.lt.s32.totalorder %v1056, 2
        %vm1058 = vcmp.eq.s32.totalorder %v1056, 0
        %v1059 = vxor.u32 %v1053, 2147483648
        %v1060 = vsel %vm1058, %v1052, %v1059
        %vm1061 = vcmp.eq.s32.totalorder %v1056, 2
        %v1062 = vxor.u32 %v1052, 2147483648
        %v1063 = vsel %vm1061, %v1062, %v1053
        %v1064 = vsel %vm1057, %v1060, %v1063
        %v1065 = vsel %vm1054, nan, %v1064
        %v1066 = vand.u32 2147483647, %v644
        %vm1067 = vcmp.le.f32.partialorder %v1066, 0.7853982
        %vm1068 = vcmp.lt.s32.totalorder %v644, 0
        %v1069 = vand.u32 %v644, 2139095040
        %v1070 = vshrl.u32 %v1069, 23
        %v1071 = vsub.s32 %v1070, 127
        %v1072 = vand.u32 2147483647, %v644
        %v1073 = vand.u32 %v1072, 8388607
        %v1074 = vor.u32 %v1073, 8388608
        %v1075 = vsub.s32 0, %v1074
        %v1076 = vadd.s32 %v1071, 1
        %vm1077 = vcmp.gt.s32.totalorder %v1076, 0
        %v1078 = vsel %vm1077, %v1076, 0
        %v1079 = vshrl.u32 %v1078, 5
        %v1080 = vand.u32 %v1078, 31
        %v1081 = vsub.s32 32, %v1080
        %v1082 = vshrl.u32 683565275, %v1081
        %v1083 = vshll.u32 683565275, %v1080
        %v1084 = vshrl.u32 2475754826, %v1081
        %v1085 = vor.u32 %v1083, %v1084
        %v1086 = vshll.u32 2475754826, %v1080
        %v1087 = vshrl.u32 2131351028, %v1081
        %v1088 = vor.u32 %v1086, %v1087
        %v1089 = vshll.u32 2131351028, %v1080
        %v1090 = vshrl.u32 2102212464, %v1081
        %v1091 = vor.u32 %v1089, %v1090
        %v1092 = vshll.u32 2102212464, %v1080
        %v1093 = vshrl.u32 920167782, %v1081
        %v1094 = vor.u32 %v1092, %v1093
        %v1095 = vshll.u32 920167782, %v1080
        %v1096 = vshrl.u32 1326507024, %v1081
        %v1097 = vor.u32 %v1095, %v1096
        %vm1098 = vcmp.lt.s32.totalorder %v1079, 1
        %vm1099 = vcmp.lt.s32.totalorder %v1079, 2
        %vm1100 = vcmp.lt.s32.totalorder %v1079, 3
        %vm1101 = vcmp.lt.s32.totalorder %v1079, 4
        %v1102 = vsel %vm1098, %v1082, %v1085
        %v1103 = vsel %vm1101, %v1091, 2102212464
        %v1104 = vsel %vm1100, %v1088, %v1103
        %v1105 = vsel %vm1099, %v1102, %v1104
        %v1106 = vsel %vm1098, %v1085, %v1088
        %v1107 = vsel %vm1101, %v1094, 920167782
        %v1108 = vsel %vm1100, %v1091, %v1107
        %v1109 = vsel %vm1099, %v1106, %v1108
        %v1110 = vsel %vm1098, %v1088, %v1091
        %v1111 = vsel %vm1101, %v1097, 1326507024
        %v1112 = vsel %vm1100, %v1094, %v1111
        %v1113 = vsel %vm1099, %v1110, %v1112
        %v1114 = vshll.u32 %v1074, 8
        %v1115 = vmul.u32.u64.compose %v1114, %v1113
        %v1116 = vextract.low.u32 %v1115
        %v1117 = vextract.high.u32 %v1115
        %v1118 = vmul.u32.u64.compose %v1114, %v1109
        %v1119 = vextract.low.u32 %v1118
        %v1120 = vextract.high.u32 %v1118
        %v1121 = vmul.u32 %v1114, %v1105
        %v1122 = vadd.s32 %v1117, %v1119
        %vm1123 = vc.u32 %v1117, %v1119
        %v1124 = vadd.s32 %v1120, 1
        %v1125 = vsel %vm1123, %v1124, %v1120
        %v1126 = vadd.s32 %v1121, %v1125
        %v1127 = vadd.s32 %v1126, 536870912
        %v1128 = vshrl.u32 %v1127, 30
        %v1129 = vshll.u32 %v1128, 30
        %v1130 = vsub.s32 %v1126, %v1129
        %vm1131 = vcmp.lt.s32.totalorder %v1130, 0
        %v1132 = vsub.s32 0, %v1130
        %v1133 = vsel %vm1131, %v1132, %v1130
        %v1134 = vclz %v1133
        %v1135 = vsub.s32 %v1134, 2
        %vm1136 = vcmp.gt.s32.totalorder 0, %v1135
        %v1137 = vsel %vm1136, 0, %v1135
        %v1138 = vsub.s32 32, %v1137
        %v1139 = vshll.u32 %v1130, %v1137
        %v1140 = vshrl.u32 %v1122, %v1138
        %v1141 = vor.u32 %v1139, %v1140
        %v1142 = vsub.s32 4294967266, %v1137
        %v1143 = vadd.s32 %v1142, 127
        %v1144 = vshll.u32 %v1143, 23
        %v1145 = vor.u32 4788187, %v1144
        %v1146 = vand.u32 2147483647, %v1145
        %v1148 = vcvt.s32.f32 %v1141
        %v1149 = vmul.f32 %v1148, %v1146
        %v1150 = vxor.u32 %v1149, 2147483648
        %v1151 = vsel %vm1068, %v1150, %v1149
        %v1152 = vsub.s32 4, %v1128
        %v1153 = vsel %vm1068, %v1152, %v1128
        %v1154 = vsel %vm1067, %v644, %v1151
        %v1155 = vsel %vm1067, 0, %v1153
        %v1156 = vcosq.f32.pop %v1154
        %v1157 = vsinq.f32.pop %v1154
        %vm1158 = vweird.f32 %v644
        %v1159 = vadd.s32 %v1155, 3
        %v1160 = vand.u32 %v1159, 3
        %vm1161 = vcmp.lt.s32.totalorder %v1160, 2
        %vm1162 = vcmp.eq.s32.totalorder %v1160, 0
        %v1163 = vxor.u32 %v1157, 2147483648
        %v1164 = vsel %vm1162, %v1156, %v1163
        %vm1165 = vcmp.eq.s32.totalorder %v1160, 2
        %v1166 = vxor.u32 %v1156, 2147483648
        %v1167 = vsel %vm1165, %v1166, %v1157
        %v1168 = vsel %vm1161, %v1164, %v1167
        %v1169 = vsel %vm1158, nan, %v1168
        %v1170 = vand.u32 2147483647, %v645
        %vm1171 = vcmp.le.f32.partialorder %v1170, 0.7853982
        %vm1172 = vcmp.lt.s32.totalorder %v645, 0
        %v1173 = vand.u32 %v645, 2139095040
        %v1174 = vshrl.u32 %v1173, 23
        %v1175 = vsub.s32 %v1174, 127
        %v1176 = vand.u32 2147483647, %v645
        %v1177 = vand.u32 %v1176, 8388607
        %v1178 = vor.u32 %v1177, 8388608
        %v1179 = vsub.s32 0, %v1178
        %v1180 = vadd.s32 %v1175, 1
        %vm1181 = vcmp.gt.s32.totalorder %v1180, 0
        %v1182 = vsel %vm1181, %v1180, 0
        %v1183 = vshrl.u32 %v1182, 5
        %v1184 = vand.u32 %v1182, 31
        %v1185 = vsub.s32 32, %v1184
        %v1186 = vshrl.u32 683565275, %v1185
        %v1187 = vshll.u32 683565275, %v1184
        %v1188 = vshrl.u32 2475754826, %v1185
        %v1189 = vor.u32 %v1187, %v1188
        %v1190 = vshll.u32 2475754826, %v1184
        %v1191 = vshrl.u32 2131351028, %v1185
        %v1192 = vor.u32 %v1190, %v1191
        %v1193 = vshll.u32 2131351028, %v1184
        %v1194 = vshrl.u32 2102212464, %v1185
        %v1195 = vor.u32 %v1193, %v1194
        %v1196 = vshll.u32 2102212464, %v1184
        %v1197 = vshrl.u32 920167782, %v1185
        %v1198 = vor.u32 %v1196, %v1197
        %v1199 = vshll.u32 920167782, %v1184
        %v1200 = vshrl.u32 1326507024, %v1185
        %v1201 = vor.u32 %v1199, %v1200
        %vm1202 = vcmp.lt.s32.totalorder %v1183, 1
        %vm1203 = vcmp.lt.s32.totalorder %v1183, 2
        %vm1204 = vcmp.lt.s32.totalorder %v1183, 3
        %vm1205 = vcmp.lt.s32.totalorder %v1183, 4
        %v1206 = vsel %vm1202, %v1186, %v1189
        %v1207 = vsel %vm1205, %v1195, 2102212464
        %v1208 = vsel %vm1204, %v1192, %v1207
        %v1209 = vsel %vm1203, %v1206, %v1208
        %v1210 = vsel %vm1202, %v1189, %v1192
        %v1211 = vsel %vm1205, %v1198, 920167782
        %v1212 = vsel %vm1204, %v1195, %v1211
        %v1213 = vsel %vm1203, %v1210, %v1212
        %v1214 = vsel %vm1202, %v1192, %v1195
        %v1215 = vsel %vm1205, %v1201, 1326507024
        %v1216 = vsel %vm1204, %v1198, %v1215
        %v1217 = vsel %vm1203, %v1214, %v1216
        %v1218 = vshll.u32 %v1178, 8
        %v1219 = vmul.u32.u64.compose %v1218, %v1217
        %v1220 = vextract.low.u32 %v1219
        %v1221 = vextract.high.u32 %v1219
        %v1222 = vmul.u32.u64.compose %v1218, %v1213
        %v1223 = vextract.low.u32 %v1222
        %v1224 = vextract.high.u32 %v1222
        %v1225 = vmul.u32 %v1218, %v1209
        %v1226 = vadd.s32 %v1221, %v1223
        %vm1227 = vc.u32 %v1221, %v1223
        %v1228 = vadd.s32 %v1224, 1
        %v1229 = vsel %vm1227, %v1228, %v1224
        %v1230 = vadd.s32 %v1225, %v1229
        %v1231 = vadd.s32 %v1230, 536870912
        %v1232 = vshrl.u32 %v1231, 30
        %v1233 = vshll.u32 %v1232, 30
        %v1234 = vsub.s32 %v1230, %v1233
        %vm1235 = vcmp.lt.s32.totalorder %v1234, 0
        %v1236 = vsub.s32 0, %v1234
        %v1237 = vsel %vm1235, %v1236, %v1234
        %v1238 = vclz %v1237
        %v1239 = vsub.s32 %v1238, 2
        %vm1240 = vcmp.gt.s32.totalorder 0, %v1239
        %v1241 = vsel %vm1240, 0, %v1239
        %v1242 = vsub.s32 32, %v1241
        %v1243 = vshll.u32 %v1234, %v1241
        %v1244 = vshrl.u32 %v1226, %v1242
        %v1245 = vor.u32 %v1243, %v1244
        %v1246 = vsub.s32 4294967266, %v1241
        %v1247 = vadd.s32 %v1246, 127
        %v1248 = vshll.u32 %v1247, 23
        %v1249 = vor.u32 4788187, %v1248
        %v1250 = vand.u32 2147483647, %v1249
        %v1252 = vcvt.s32.f32 %v1245
        %v1253 = vmul.f32 %v1252, %v1250
        %v1254 = vxor.u32 %v1253, 2147483648
        %v1255 = vsel %vm1172, %v1254, %v1253
        %v1256 = vsub.s32 4, %v1232
        %v1257 = vsel %vm1172, %v1256, %v1232
        %v1258 = vsel %vm1171, %v645, %v1255
        %v1259 = vsel %vm1171, 0, %v1257
        %v1260 = vcosq.f32.pop %v1258
        %v1261 = vsinq.f32.pop %v1258
        %vm1262 = vweird.f32 %v645
        %v1263 = vadd.s32 %v1259, 3
        %v1264 = vand.u32 %v1263, 3
        %vm1265 = vcmp.lt.s32.totalorder %v1264, 2
        %vm1266 = vcmp.eq.s32.totalorder %v1264, 0
        %v1267 = vxor.u32 %v1261, 2147483648
        %v1268 = vsel %vm1266, %v1260, %v1267
        %vm1269 = vcmp.eq.s32.totalorder %v1264, 2
        %v1270 = vxor.u32 %v1260, 2147483648
        %v1271 = vsel %vm1269, %v1270, %v1261
        %v1272 = vsel %vm1265, %v1268, %v1271
        %v1273 = vsel %vm1262, nan, %v1272
        %v1274 = vand.u32 2147483647, %v646
        %vm1275 = vcmp.le.f32.partialorder %v1274, 0.7853982
        %vm1276 = vcmp.lt.s32.totalorder %v646, 0
        %v1277 = vand.u32 %v646, 2139095040
        %v1278 = vshrl.u32 %v1277, 23
        %v1279 = vsub.s32 %v1278, 127
        %v1280 = vand.u32 2147483647, %v646
        %v1281 = vand.u32 %v1280, 8388607
        %v1282 = vor.u32 %v1281, 8388608
        %v1283 = vsub.s32 0, %v1282
        %v1284 = vadd.s32 %v1279, 1
        %vm1285 = vcmp.gt.s32.totalorder %v1284, 0
        %v1286 = vsel %vm1285, %v1284, 0
        %v1287 = vshrl.u32 %v1286, 5
        %v1288 = vand.u32 %v1286, 31
        %v1289 = vsub.s32 32, %v1288
        %v1290 = vshrl.u32 683565275, %v1289
        %v1291 = vshll.u32 683565275, %v1288
        %v1292 = vshrl.u32 2475754826, %v1289
        %v1293 = vor.u32 %v1291, %v1292
        %v1294 = vshll.u32 2475754826, %v1288
        %v1295 = vshrl.u32 2131351028, %v1289
        %v1296 = vor.u32 %v1294, %v1295
        %v1297 = vshll.u32 2131351028, %v1288
        %v1298 = vshrl.u32 2102212464, %v1289
        %v1299 = vor.u32 %v1297, %v1298
        %v1300 = vshll.u32 2102212464, %v1288
        %v1301 = vshrl.u32 920167782, %v1289
        %v1302 = vor.u32 %v1300, %v1301
        %v1303 = vshll.u32 920167782, %v1288
        %v1304 = vshrl.u32 1326507024, %v1289
        %v1305 = vor.u32 %v1303, %v1304
        %vm1306 = vcmp.lt.s32.totalorder %v1287, 1
        %vm1307 = vcmp.lt.s32.totalorder %v1287, 2
        %vm1308 = vcmp.lt.s32.totalorder %v1287, 3
        %vm1309 = vcmp.lt.s32.totalorder %v1287, 4
        %v1310 = vsel %vm1306, %v1290, %v1293
        %v1311 = vsel %vm1309, %v1299, 2102212464
        %v1312 = vsel %vm1308, %v1296, %v1311
        %v1313 = vsel %vm1307, %v1310, %v1312
        %v1314 = vsel %vm1306, %v1293, %v1296
        %v1315 = vsel %vm1309, %v1302, 920167782
        %v1316 = vsel %vm1308, %v1299, %v1315
        %v1317 = vsel %vm1307, %v1314, %v1316
        %v1318 = vsel %vm1306, %v1296, %v1299
        %v1319 = vsel %vm1309, %v1305, 1326507024
        %v1320 = vsel %vm1308, %v1302, %v1319
        %v1321 = vsel %vm1307, %v1318, %v1320
        %v1322 = vshll.u32 %v1282, 8
        %v1323 = vmul.u32.u64.compose %v1322, %v1321
        %v1324 = vextract.low.u32 %v1323
        %v1325 = vextract.high.u32 %v1323
        %v1326 = vmul.u32.u64.compose %v1322, %v1317
        %v1327 = vextract.low.u32 %v1326
        %v1328 = vextract.high.u32 %v1326
        %v1329 = vmul.u32 %v1322, %v1313
        %v1330 = vadd.s32 %v1325, %v1327
        %vm1331 = vc.u32 %v1325, %v1327
        %v1332 = vadd.s32 %v1328, 1
        %v1333 = vsel %vm1331, %v1332, %v1328
        %v1334 = vadd.s32 %v1329, %v1333
        %v1335 = vadd.s32 %v1334, 536870912
        %v1336 = vshrl.u32 %v1335, 30
        %v1337 = vshll.u32 %v1336, 30
        %v1338 = vsub.s32 %v1334, %v1337
        %vm1339 = vcmp.lt.s32.totalorder %v1338, 0
        %v1340 = vsub.s32 0, %v1338
        %v1341 = vsel %vm1339, %v1340, %v1338
        %v1342 = vclz %v1341
        %v1343 = vsub.s32 %v1342, 2
        %vm1344 = vcmp.gt.s32.totalorder 0, %v1343
        %v1345 = vsel %vm1344, 0, %v1343
        %v1346 = vsub.s32 32, %v1345
        %v1347 = vshll.u32 %v1338, %v1345
        %v1348 = vshrl.u32 %v1330, %v1346
        %v1349 = vor.u32 %v1347, %v1348
        %v1350 = vsub.s32 4294967266, %v1345
        %v1351 = vadd.s32 %v1350, 127
        %v1352 = vshll.u32 %v1351, 23
        %v1353 = vor.u32 4788187, %v1352
        %v1354 = vand.u32 2147483647, %v1353
        %v1356 = vcvt.s32.f32 %v1349
        %v1357 = vmul.f32 %v1356, %v1354
        %v1358 = vxor.u32 %v1357, 2147483648
        %v1359 = vsel %vm1276, %v1358, %v1357
        %v1360 = vsub.s32 4, %v1336
        %v1361 = vsel %vm1276, %v1360, %v1336
        %v1362 = vsel %vm1275, %v646, %v1359
        %v1363 = vsel %vm1275, 0, %v1361
        %v1364 = vcosq.f32.pop %v1362
        %v1365 = vsinq.f32.pop %v1362
        %vm1366 = vweird.f32 %v646
        %v1367 = vadd.s32 %v1363, 3
        %v1368 = vand.u32 %v1367, 3
        %vm1369 = vcmp.lt.s32.totalorder %v1368, 2
        %vm1370 = vcmp.eq.s32.totalorder %v1368, 0
        %v1371 = vxor.u32 %v1365, 2147483648
        %v1372 = vsel %vm1370, %v1364, %v1371
        %vm1373 = vcmp.eq.s32.totalorder %v1368, 2
        %v1374 = vxor.u32 %v1364, 2147483648
        %v1375 = vsel %vm1373, %v1374, %v1365
        %v1376 = vsel %vm1369, %v1372, %v1375
        %v1377 = vsel %vm1366, nan, %v1376
        %v1378 = vand.u32 2147483647, %v647
        %vm1379 = vcmp.le.f32.partialorder %v1378, 0.7853982
        %vm1380 = vcmp.lt.s32.totalorder %v647, 0
        %v1381 = vand.u32 %v647, 2139095040
        %v1382 = vshrl.u32 %v1381, 23
        %v1383 = vsub.s32 %v1382, 127
        %v1384 = vand.u32 2147483647, %v647
        %v1385 = vand.u32 %v1384, 8388607
        %v1386 = vor.u32 %v1385, 8388608
        %v1387 = vsub.s32 0, %v1386
        %v1388 = vadd.s32 %v1383, 1
        %vm1389 = vcmp.gt.s32.totalorder %v1388, 0
        %v1390 = vsel %vm1389, %v1388, 0
        %v1391 = vshrl.u32 %v1390, 5
        %v1392 = vand.u32 %v1390, 31
        %v1393 = vsub.s32 32, %v1392
        %v1394 = vshrl.u32 683565275, %v1393
        %v1395 = vshll.u32 683565275, %v1392
        %v1396 = vshrl.u32 2475754826, %v1393
        %v1397 = vor.u32 %v1395, %v1396
        %v1398 = vshll.u32 2475754826, %v1392
        %v1399 = vshrl.u32 2131351028, %v1393
        %v1400 = vor.u32 %v1398, %v1399
        %v1401 = vshll.u32 2131351028, %v1392
        %v1402 = vshrl.u32 2102212464, %v1393
        %v1403 = vor.u32 %v1401, %v1402
        %v1404 = vshll.u32 2102212464, %v1392
        %v1405 = vshrl.u32 920167782, %v1393
        %v1406 = vor.u32 %v1404, %v1405
        %v1407 = vshll.u32 920167782, %v1392
        %v1408 = vshrl.u32 1326507024, %v1393
        %v1409 = vor.u32 %v1407, %v1408
        %vm1410 = vcmp.lt.s32.totalorder %v1391, 1
        %vm1411 = vcmp.lt.s32.totalorder %v1391, 2
        %vm1412 = vcmp.lt.s32.totalorder %v1391, 3
        %vm1413 = vcmp.lt.s32.totalorder %v1391, 4
        %v1414 = vsel %vm1410, %v1394, %v1397
        %v1415 = vsel %vm1413, %v1403, 2102212464
        %v1416 = vsel %vm1412, %v1400, %v1415
        %v1417 = vsel %vm1411, %v1414, %v1416
        %v1418 = vsel %vm1410, %v1397, %v1400
        %v1419 = vsel %vm1413, %v1406, 920167782
        %v1420 = vsel %vm1412, %v1403, %v1419
        %v1421 = vsel %vm1411, %v1418, %v1420
        %v1422 = vsel %vm1410, %v1400, %v1403
        %v1423 = vsel %vm1413, %v1409, 1326507024
        %v1424 = vsel %vm1412, %v1406, %v1423
        %v1425 = vsel %vm1411, %v1422, %v1424
        %v1426 = vshll.u32 %v1386, 8
        %v1427 = vmul.u32.u64.compose %v1426, %v1425
        %v1428 = vextract.low.u32 %v1427
        %v1429 = vextract.high.u32 %v1427
        %v1430 = vmul.u32.u64.compose %v1426, %v1421
        %v1431 = vextract.low.u32 %v1430
        %v1432 = vextract.high.u32 %v1430
        %v1433 = vmul.u32 %v1426, %v1417
        %v1434 = vadd.s32 %v1429, %v1431
        %vm1435 = vc.u32 %v1429, %v1431
        %v1436 = vadd.s32 %v1432, 1
        %v1437 = vsel %vm1435, %v1436, %v1432
        %v1438 = vadd.s32 %v1433, %v1437
        %v1439 = vadd.s32 %v1438, 536870912
        %v1440 = vshrl.u32 %v1439, 30
        %v1441 = vshll.u32 %v1440, 30
        %v1442 = vsub.s32 %v1438, %v1441
        %vm1443 = vcmp.lt.s32.totalorder %v1442, 0
        %v1444 = vsub.s32 0, %v1442
        %v1445 = vsel %vm1443, %v1444, %v1442
        %v1446 = vclz %v1445
        %v1447 = vsub.s32 %v1446, 2
        %vm1448 = vcmp.gt.s32.totalorder 0, %v1447
        %v1449 = vsel %vm1448, 0, %v1447
        %v1450 = vsub.s32 32, %v1449
        %v1451 = vshll.u32 %v1442, %v1449
        %v1452 = vshrl.u32 %v1434, %v1450
        %v1453 = vor.u32 %v1451, %v1452
        %v1454 = vsub.s32 4294967266, %v1449
        %v1455 = vadd.s32 %v1454, 127
        %v1456 = vshll.u32 %v1455, 23
        %v1457 = vor.u32 4788187, %v1456
        %v1458 = vand.u32 2147483647, %v1457
        %v1460 = vcvt.s32.f32 %v1453
        %v1461 = vmul.f32 %v1460, %v1458
        %v1462 = vxor.u32 %v1461, 2147483648
        %v1463 = vsel %vm1380, %v1462, %v1461
        %v1464 = vsub.s32 4, %v1440
        %v1465 = vsel %vm1380, %v1464, %v1440
        %v1466 = vsel %vm1379, %v647, %v1463
        %v1467 = vsel %vm1379, 0, %v1465
        %v1468 = vcosq.f32.pop %v1466
        %v1469 = vsinq.f32.pop %v1466
        %vm1470 = vweird.f32 %v647
        %v1471 = vadd.s32 %v1467, 3
        %v1472 = vand.u32 %v1471, 3
        %vm1473 = vcmp.lt.s32.totalorder %v1472, 2
        %vm1474 = vcmp.eq.s32.totalorder %v1472, 0
        %v1475 = vxor.u32 %v1469, 2147483648
        %v1476 = vsel %vm1474, %v1468, %v1475
        %vm1477 = vcmp.eq.s32.totalorder %v1472, 2
        %v1478 = vxor.u32 %v1468, 2147483648
        %v1479 = vsel %vm1477, %v1478, %v1469
        %v1480 = vsel %vm1473, %v1476, %v1479
        %v1481 = vsel %vm1470, nan, %v1480
        %v1482 = vand.u32 2147483647, %v648
        %vm1483 = vcmp.le.f32.partialorder %v1482, 0.7853982
        %vm1484 = vcmp.lt.s32.totalorder %v648, 0
        %v1485 = vand.u32 %v648, 2139095040
        %v1486 = vshrl.u32 %v1485, 23
        %v1487 = vsub.s32 %v1486, 127
        %v1488 = vand.u32 2147483647, %v648
        %v1489 = vand.u32 %v1488, 8388607
        %v1490 = vor.u32 %v1489, 8388608
        %v1491 = vsub.s32 0, %v1490
        %v1492 = vadd.s32 %v1487, 1
        %vm1493 = vcmp.gt.s32.totalorder %v1492, 0
        %v1494 = vsel %vm1493, %v1492, 0
        %v1495 = vshrl.u32 %v1494, 5
        %v1496 = vand.u32 %v1494, 31
        %v1497 = vsub.s32 32, %v1496
        %v1498 = vshrl.u32 683565275, %v1497
        %v1499 = vshll.u32 683565275, %v1496
        %v1500 = vshrl.u32 2475754826, %v1497
        %v1501 = vor.u32 %v1499, %v1500
        %v1502 = vshll.u32 2475754826, %v1496
        %v1503 = vshrl.u32 2131351028, %v1497
        %v1504 = vor.u32 %v1502, %v1503
        %v1505 = vshll.u32 2131351028, %v1496
        %v1506 = vshrl.u32 2102212464, %v1497
        %v1507 = vor.u32 %v1505, %v1506
        %v1508 = vshll.u32 2102212464, %v1496
        %v1509 = vshrl.u32 920167782, %v1497
        %v1510 = vor.u32 %v1508, %v1509
        %v1511 = vshll.u32 920167782, %v1496
        %v1512 = vshrl.u32 1326507024, %v1497
        %v1513 = vor.u32 %v1511, %v1512
        %vm1514 = vcmp.lt.s32.totalorder %v1495, 1
        %vm1515 = vcmp.lt.s32.totalorder %v1495, 2
        %vm1516 = vcmp.lt.s32.totalorder %v1495, 3
        %vm1517 = vcmp.lt.s32.totalorder %v1495, 4
        %v1518 = vsel %vm1514, %v1498, %v1501
        %v1519 = vsel %vm1517, %v1507, 2102212464
        %v1520 = vsel %vm1516, %v1504, %v1519
        %v1521 = vsel %vm1515, %v1518, %v1520
        %v1522 = vsel %vm1514, %v1501, %v1504
        %v1523 = vsel %vm1517, %v1510, 920167782
        %v1524 = vsel %vm1516, %v1507, %v1523
        %v1525 = vsel %vm1515, %v1522, %v1524
        %v1526 = vsel %vm1514, %v1504, %v1507
        %v1527 = vsel %vm1517, %v1513, 1326507024
        %v1528 = vsel %vm1516, %v1510, %v1527
        %v1529 = vsel %vm1515, %v1526, %v1528
        %v1530 = vshll.u32 %v1490, 8
        %v1531 = vmul.u32.u64.compose %v1530, %v1529
        %v1532 = vextract.low.u32 %v1531
        %v1533 = vextract.high.u32 %v1531
        %v1534 = vmul.u32.u64.compose %v1530, %v1525
        %v1535 = vextract.low.u32 %v1534
        %v1536 = vextract.high.u32 %v1534
        %v1537 = vmul.u32 %v1530, %v1521
        %v1538 = vadd.s32 %v1533, %v1535
        %vm1539 = vc.u32 %v1533, %v1535
        %v1540 = vadd.s32 %v1536, 1
        %v1541 = vsel %vm1539, %v1540, %v1536
        %v1542 = vadd.s32 %v1537, %v1541
        %v1543 = vadd.s32 %v1542, 536870912
        %v1544 = vshrl.u32 %v1543, 30
        %v1545 = vshll.u32 %v1544, 30
        %v1546 = vsub.s32 %v1542, %v1545
        %vm1547 = vcmp.lt.s32.totalorder %v1546, 0
        %v1548 = vsub.s32 0, %v1546
        %v1549 = vsel %vm1547, %v1548, %v1546
        %v1550 = vclz %v1549
        %v1551 = vsub.s32 %v1550, 2
        %vm1552 = vcmp.gt.s32.totalorder 0, %v1551
        %v1553 = vsel %vm1552, 0, %v1551
        %v1554 = vsub.s32 32, %v1553
        %v1555 = vshll.u32 %v1546, %v1553
        %v1556 = vshrl.u32 %v1538, %v1554
        %v1557 = vor.u32 %v1555, %v1556
        %v1558 = vsub.s32 4294967266, %v1553
        %v1559 = vadd.s32 %v1558, 127
        %v1560 = vshll.u32 %v1559, 23
        %v1561 = vor.u32 4788187, %v1560
        %v1562 = vand.u32 2147483647, %v1561
        %v1564 = vcvt.s32.f32 %v1557
        %v1565 = vmul.f32 %v1564, %v1562
        %v1566 = vxor.u32 %v1565, 2147483648
        %v1567 = vsel %vm1484, %v1566, %v1565
        %v1568 = vsub.s32 4, %v1544
        %v1569 = vsel %vm1484, %v1568, %v1544
        %v1570 = vsel %vm1483, %v648, %v1567
        %v1571 = vsel %vm1483, 0, %v1569
        %v1572 = vcosq.f32.pop %v1570
        %v1573 = vsinq.f32.pop %v1570
        %vm1574 = vweird.f32 %v648
        %v1575 = vadd.s32 %v1571, 3
        %v1576 = vand.u32 %v1575, 3
        %vm1577 = vcmp.lt.s32.totalorder %v1576, 2
        %vm1578 = vcmp.eq.s32.totalorder %v1576, 0
        %v1579 = vxor.u32 %v1573, 2147483648
        %v1580 = vsel %vm1578, %v1572, %v1579
        %vm1581 = vcmp.eq.s32.totalorder %v1576, 2
        %v1582 = vxor.u32 %v1572, 2147483648
        %v1583 = vsel %vm1581, %v1582, %v1573
        %v1584 = vsel %vm1577, %v1580, %v1583
        %v1585 = vsel %vm1574, nan, %v1584
        %v1586 = vand.u32 2147483647, %v649
        %vm1587 = vcmp.le.f32.partialorder %v1586, 0.7853982
        %vm1588 = vcmp.lt.s32.totalorder %v649, 0
        %v1589 = vand.u32 %v649, 2139095040
        %v1590 = vshrl.u32 %v1589, 23
        %v1591 = vsub.s32 %v1590, 127
        %v1592 = vand.u32 2147483647, %v649
        %v1593 = vand.u32 %v1592, 8388607
        %v1594 = vor.u32 %v1593, 8388608
        %v1595 = vsub.s32 0, %v1594
        %v1596 = vadd.s32 %v1591, 1
        %vm1597 = vcmp.gt.s32.totalorder %v1596, 0
        %v1598 = vsel %vm1597, %v1596, 0
        %v1599 = vshrl.u32 %v1598, 5
        %v1600 = vand.u32 %v1598, 31
        %v1601 = vsub.s32 32, %v1600
        %v1602 = vshrl.u32 683565275, %v1601
        %v1603 = vshll.u32 683565275, %v1600
        %v1604 = vshrl.u32 2475754826, %v1601
        %v1605 = vor.u32 %v1603, %v1604
        %v1606 = vshll.u32 2475754826, %v1600
        %v1607 = vshrl.u32 2131351028, %v1601
        %v1608 = vor.u32 %v1606, %v1607
        %v1609 = vshll.u32 2131351028, %v1600
        %v1610 = vshrl.u32 2102212464, %v1601
        %v1611 = vor.u32 %v1609, %v1610
        %v1612 = vshll.u32 2102212464, %v1600
        %v1613 = vshrl.u32 920167782, %v1601
        %v1614 = vor.u32 %v1612, %v1613
        %v1615 = vshll.u32 920167782, %v1600
        %v1616 = vshrl.u32 1326507024, %v1601
        %v1617 = vor.u32 %v1615, %v1616
        %vm1618 = vcmp.lt.s32.totalorder %v1599, 1
        %vm1619 = vcmp.lt.s32.totalorder %v1599, 2
        %vm1620 = vcmp.lt.s32.totalorder %v1599, 3
        %vm1621 = vcmp.lt.s32.totalorder %v1599, 4
        %v1622 = vsel %vm1618, %v1602, %v1605
        %v1623 = vsel %vm1621, %v1611, 2102212464
        %v1624 = vsel %vm1620, %v1608, %v1623
        %v1625 = vsel %vm1619, %v1622, %v1624
        %v1626 = vsel %vm1618, %v1605, %v1608
        %v1627 = vsel %vm1621, %v1614, 920167782
        %v1628 = vsel %vm1620, %v1611, %v1627
        %v1629 = vsel %vm1619, %v1626, %v1628
        %v1630 = vsel %vm1618, %v1608, %v1611
        %v1631 = vsel %vm1621, %v1617, 1326507024
        %v1632 = vsel %vm1620, %v1614, %v1631
        %v1633 = vsel %vm1619, %v1630, %v1632
        %v1634 = vshll.u32 %v1594, 8
        %v1635 = vmul.u32.u64.compose %v1634, %v1633
        %v1636 = vextract.low.u32 %v1635
        %v1637 = vextract.high.u32 %v1635
        %v1638 = vmul.u32.u64.compose %v1634, %v1629
        %v1639 = vextract.low.u32 %v1638
        %v1640 = vextract.high.u32 %v1638
        %v1641 = vmul.u32 %v1634, %v1625
        %v1642 = vadd.s32 %v1637, %v1639
        %vm1643 = vc.u32 %v1637, %v1639
        %v1644 = vadd.s32 %v1640, 1
        %v1645 = vsel %vm1643, %v1644, %v1640
        %v1646 = vadd.s32 %v1641, %v1645
        %v1647 = vadd.s32 %v1646, 536870912
        %v1648 = vshrl.u32 %v1647, 30
        %v1649 = vshll.u32 %v1648, 30
        %v1650 = vsub.s32 %v1646, %v1649
        %vm1651 = vcmp.lt.s32.totalorder %v1650, 0
        %v1652 = vsub.s32 0, %v1650
        %v1653 = vsel %vm1651, %v1652, %v1650
        %v1654 = vclz %v1653
        %v1655 = vsub.s32 %v1654, 2
        %vm1656 = vcmp.gt.s32.totalorder 0, %v1655
        %v1657 = vsel %vm1656, 0, %v1655
        %v1658 = vsub.s32 32, %v1657
        %v1659 = vshll.u32 %v1650, %v1657
        %v1660 = vshrl.u32 %v1642, %v1658
        %v1661 = vor.u32 %v1659, %v1660
        %v1662 = vsub.s32 4294967266, %v1657
        %v1663 = vadd.s32 %v1662, 127
        %v1664 = vshll.u32 %v1663, 23
        %v1665 = vor.u32 4788187, %v1664
        %v1666 = vand.u32 2147483647, %v1665
        %v1668 = vcvt.s32.f32 %v1661
        %v1669 = vmul.f32 %v1668, %v1666
        %v1670 = vxor.u32 %v1669, 2147483648
        %v1671 = vsel %vm1588, %v1670, %v1669
        %v1672 = vsub.s32 4, %v1648
        %v1673 = vsel %vm1588, %v1672, %v1648
        %v1674 = vsel %vm1587, %v649, %v1671
        %v1675 = vsel %vm1587, 0, %v1673
        %v1676 = vcosq.f32.pop %v1674
        %v1677 = vsinq.f32.pop %v1674
        %vm1678 = vweird.f32 %v649
        %v1679 = vadd.s32 %v1675, 3
        %v1680 = vand.u32 %v1679, 3
        %vm1681 = vcmp.lt.s32.totalorder %v1680, 2
        %vm1682 = vcmp.eq.s32.totalorder %v1680, 0
        %v1683 = vxor.u32 %v1677, 2147483648
        %v1684 = vsel %vm1682, %v1676, %v1683
        %vm1685 = vcmp.eq.s32.totalorder %v1680, 2
        %v1686 = vxor.u32 %v1676, 2147483648
        %v1687 = vsel %vm1685, %v1686, %v1677
        %v1688 = vsel %vm1681, %v1684, %v1687
        %v1689 = vsel %vm1678, nan, %v1688
        %v1690 = vmul.f32 %v753, %v753
        %v1691 = vmul.f32 %v857, %v857
        %v1692 = vmul.f32 %v961, %v961
        %v1693 = vmul.f32 %v1065, %v1065
        %v1694 = vmul.f32 %v1169, %v1169
        %v1695 = vmul.f32 %v1273, %v1273
        %v1696 = vmul.f32 %v1377, %v1377
        %v1697 = vmul.f32 %v1481, %v1481
        %v1698 = vmul.f32 %v1585, %v1585
        %v1699 = vmul.f32 %v1689, %v1689
        %1701 = vset.pattern.permute.xlu0 0
        %1702 = vperm.xlu0 %1701, %v628
        %v1703 = vpop.permute.xlu0 %1702
        %1706 = vset.pattern.permute.xlu0 0
        %1707 = vperm.xlu0 %1706, %v629
        %v1708 = vpop.permute.xlu0 %1707
        %v1710 = vmul.f32 %v1703, %v1690
        %v1711 = vmul.f32 %v1703, %v1691
        %v1712 = vmul.f32 %v1703, %v1692
        %v1713 = vmul.f32 %v1703, %v1693
        %v1714 = vmul.f32 %v1703, %v1694
        %v1715 = vmul.f32 %v1708, %v1695
        %v1716 = vmul.f32 %v1708, %v1696
        %v1717 = vmul.f32 %v1708, %v1697
        %v1718 = vmul.f32 %v1708, %v1698
        %v1719 = vmul.f32 %v1708, %v1699
        %v1720 = vadd.f32 %v622, %v1710
        %v1721 = vadd.f32 %v598, %v1711
        %v1722 = vadd.f32 %v599, %v1712
        %v1723 = vadd.f32 %v600, %v1713
        %v1724 = vadd.f32 %v624, %v1714
        %v1725 = vadd.f32 %v623, %v1715
        %v1726 = vadd.f32 %v601, %v1716
        %v1727 = vadd.f32 %v602, %v1717
        %v1728 = vadd.f32 %v603, %v1718
        %v1729 = vadd.f32 %v625, %v1719
        %v1730 = vpack.c.bf16 %v1725, %v1720
        %v1731 = vpack.c.bf16 %v1726, %v1721
        %v1732 = vpack.c.bf16 %v1727, %v1722
        %v1733 = vpack.c.bf16 %v1728, %v1723
        %v1734 = vpack.c.bf16 %v1729, %v1724
        %1740 = vrot.lane.b32.xlu0 %v1730, 125
        %v1741 = vpop.permute.xlu0 %1740
        %1742 = vrot.lane.b32.xlu0 %v1731, 125
        %v1743 = vpop.permute.xlu0 %1742
        %1744 = vrot.lane.b32.xlu0 %v1732, 125
        %v1745 = vpop.permute.xlu0 %1744
        %1746 = vrot.lane.b32.xlu0 %v1733, 125
        %v1747 = vpop.permute.xlu0 %1746
        %1748 = vrot.lane.b32.xlu0 %v1734, 125
        %v1749 = vpop.permute.xlu0 %1748
        %vm1750 = vcmask 1022976
        %v1751 = vsel %vm1750, %v1741, %v1743
        %v1752 = vsel %vm1750, %v1743, %v1745
        %v1753 = vsel %vm1750, %v1745, %v1747
        %v1754 = vsel %vm1750, %v1747, %v1749
        %1759 = vrot.lane.b32.xlu0 %v1730, 122
        %v1760 = vpop.permute.xlu0 %1759
        %1761 = vrot.lane.b32.xlu0 %v1731, 122
        %v1762 = vpop.permute.xlu0 %1761
        %1763 = vrot.lane.b32.xlu0 %v1732, 122
        %v1764 = vpop.permute.xlu0 %1763
        %1765 = vrot.lane.b32.xlu0 %v1733, 122
        %v1766 = vpop.permute.xlu0 %1765
        %1767 = vrot.lane.b32.xlu0 %v1734, 122
        %v1768 = vpop.permute.xlu0 %1767
        %vm1769 = vcmask 998400
        %v1770 = vsel %vm1769, %v1760, %v1762
        %v1771 = vsel %vm1769, %v1762, %v1764
        %v1772 = vsel %vm1769, %v1764, %v1766
        %v1773 = vsel %vm1769, %v1766, %v1768
        %1778 = vrot.lane.b32.xlu0 %v1730, 119
        %v1779 = vpop.permute.xlu0 %1778
        %1780 = vrot.lane.b32.xlu0 %v1731, 119
        %v1781 = vpop.permute.xlu0 %1780
        %1782 = vrot.lane.b32.xlu0 %v1732, 119
        %v1783 = vpop.permute.xlu0 %1782
        %1784 = vrot.lane.b32.xlu0 %v1733, 119
        %v1785 = vpop.permute.xlu0 %1784
        %1786 = vrot.lane.b32.xlu0 %v1734, 119
        %v1787 = vpop.permute.xlu0 %1786
        %vm1788 = vcmask 973824
        %v1789 = vsel %vm1788, %v1779, %v1781
        %v1790 = vsel %vm1788, %v1781, %v1783
        %v1791 = vsel %vm1788, %v1783, %v1785
        %v1792 = vsel %vm1788, %v1785, %v1787
        %1797 = vrot.lane.b32.xlu0 %v1730, 116
        %v1798 = vpop.permute.xlu0 %1797
        %1799 = vrot.lane.b32.xlu0 %v1731, 116
        %v1800 = vpop.permute.xlu0 %1799
        %1801 = vrot.lane.b32.xlu0 %v1732, 116
        %v1802 = vpop.permute.xlu0 %1801
        %1803 = vrot.lane.b32.xlu0 %v1733, 116
        %v1804 = vpop.permute.xlu0 %1803
        %1805 = vrot.lane.b32.xlu0 %v1734, 116
        %v1806 = vpop.permute.xlu0 %1805
        %vm1807 = vcmask 949248
        %v1808 = vsel %vm1807, %v1798, %v1800
        %v1809 = vsel %vm1807, %v1800, %v1802
        %v1810 = vsel %vm1807, %v1802, %v1804
        %v1811 = vsel %vm1807, %v1804, %v1806
        %1816 = vrot.lane.b32.xlu0 %v1730, 113
        %v1817 = vpop.permute.xlu0 %1816
        %1818 = vrot.lane.b32.xlu0 %v1731, 113
        %v1819 = vpop.permute.xlu0 %1818
        %1820 = vrot.lane.b32.xlu0 %v1732, 113
        %v1821 = vpop.permute.xlu0 %1820
        %1822 = vrot.lane.b32.xlu0 %v1733, 113
        %v1823 = vpop.permute.xlu0 %1822
        %1824 = vrot.lane.b32.xlu0 %v1734, 113
        %v1825 = vpop.permute.xlu0 %1824
        %vm1826 = vcmask 924672
        %v1827 = vsel %vm1826, %v1817, %v1819
        %v1828 = vsel %vm1826, %v1819, %v1821
        %v1829 = vsel %vm1826, %v1821, %v1823
        %v1830 = vsel %vm1826, %v1823, %v1825
        %1835 = vrot.lane.b32.xlu0 %v1730, 110
        %v1836 = vpop.permute.xlu0 %1835
        %1837 = vrot.lane.b32.xlu0 %v1731, 110
        %v1838 = vpop.permute.xlu0 %1837
        %1839 = vrot.lane.b32.xlu0 %v1732, 110
        %v1840 = vpop.permute.xlu0 %1839
        %1841 = vrot.lane.b32.xlu0 %v1733, 110
        %v1842 = vpop.permute.xlu0 %1841
        %1843 = vrot.lane.b32.xlu0 %v1734, 110
        %v1844 = vpop.permute.xlu0 %1843
        %vm1845 = vcmask 900096
        %v1846 = vsel %vm1845, %v1836, %v1838
        %v1847 = vsel %vm1845, %v1838, %v1840
        %v1848 = vsel %vm1845, %v1840, %v1842
        %v1849 = vsel %vm1845, %v1842, %v1844
        %v1854 = vld [vmem:[%s5] sm:$0xf]
        %v1855 = vld [vmem:[%s5 + $0x4] sm:$0xf]
        %v1856 = vld [vmem:[%s6] sm:$0xff]
        %v1857 = vld [vmem:[%s6 + $0x8] sm:$0xff]
        %1859 = vset.pattern.permute.xlu0 0
        %1860 = vperm.xlu0 %1859, %v1856
        %v1861 = vpop.permute.xlu0 %1860
        %1864 = vset.pattern.permute.xlu0 0
        %1865 = vperm.xlu0 %1864, %v1857
        %v1866 = vpop.permute.xlu0 %1865
        %v1870 = vunpack.c.l.b16 %v1854
        %v1871 = vunpack.c.l.b16 %v1855
        %v1872 = vpack.c.b16 %v1871, %v1870
        %vm1873 = vcmask 916480
        %v1875 = vsel %vm1873, %v1872, 0
        %1877 = vmatprep.subr.bf16.mxu0 %v1731
        %1878 = vmatpush1.bf16.msra.mxu0 %v1730
        %1879 = vmatprep.subr.bf16.mxu0 %v1752
        %1880 = vmatpush1.bf16.msra.mxu0 %v1751
        %1881 = vmatprep.subr.bf16.mxu0 %v1771
        %1882 = vmatpush1.bf16.msra.mxu0 %v1770
        %1883 = vmatprep.subr.bf16.mxu0 %v1790
        %1884 = vmatpush1.bf16.msra.mxu0 %v1789
        %1885 = vmatprep.subr.bf16.mxu0 %v1809
        %1886 = vmatpush1.bf16.msra.mxu0 %v1808
        %1887 = vmatprep.subr.bf16.mxu0 %v1828
        %1888 = vmatpush1.bf16.msra.mxu0 %v1827
        %1889 = vmatprep.subr.bf16.mxu0 %v1847
        %1890 = vmatpush1.bf16.msra.mxu0 %v1846
        %1891 = vmatprep.subr.bf16.mxu0 0
        %1892 = vmatpush1.bf16.msra.mxu0 0
        %1893 = vmatprep.subr.bf16.mxu0 0
        %1894 = vmatpush1.bf16.msra.mxu0 0
        %1895 = vmatprep.subr.bf16.mxu0 0
        %1896 = vmatpush1.bf16.msra.mxu0 0
        %1897 = vmatprep.subr.bf16.mxu0 0
        %1898 = vmatpush1.bf16.msra.mxu0 0
        %1899 = vmatprep.subr.bf16.mxu0 0
        %1900 = vmatpush1.bf16.msra.mxu0 0
        %1901 = vmatprep.subr.bf16.mxu0 0
        %1902 = vmatpush1.bf16.msra.mxu0 0
        %1903 = vmatprep.subr.bf16.mxu0 0
        %1904 = vmatpush1.bf16.msra.mxu0 0
        %1905 = vmatprep.subr.bf16.mxu0 0
        %1906 = vmatpush1.bf16.msra.mxu0 0
        %1907 = vmatprep.subr.bf16.mxu0 0
        %1908 = vmatpush1.bf16.msra.mxu0 0
        %1909 = vmatprep.mubr.bf16.mxu0 0
        %1910 = vmatmul.mubr.bf16.gmra.mrb[0].mxu0 %v1875
        %v1911 = vpop.f32.mrb[0].mxu0
        %v1912 = vadd.f32 %v1861, %v1911
        %v1913 = vpop.f32.mrb[0].mxu0
        %v1914 = vadd.f32 %v1861, %v1913
        %v1915 = vpop.f32.mrb[0].mxu0
        %v1916 = vadd.f32 %v1866, %v1915
        %v1917 = vpop.f32.mrb[0].mxu0
        %v1918 = vadd.f32 %v1866, %v1917
        %1919 = vdwg.mxu0
        %1920 = vmatprep.subr.bf16.mxu0 %v1733
        %1921 = vmatpush1.bf16.msra.mxu0 %v1732
        %1922 = vmatprep.subr.bf16.mxu0 %v1754
        %1923 = vmatpush1.bf16.msra.mxu0 %v1753
        %1924 = vmatprep.subr.bf16.mxu0 %v1773
        %1925 = vmatpush1.bf16.msra.mxu0 %v1772
        %1926 = vmatprep.subr.bf16.mxu0 %v1792
        %1927 = vmatpush1.bf16.msra.mxu0 %v1791
        %1928 = vmatprep.subr.bf16.mxu0 %v1811
        %1929 = vmatpush1.bf16.msra.mxu0 %v1810
        %1930 = vmatprep.subr.bf16.mxu0 %v1830
        %1931 = vmatpush1.bf16.msra.mxu0 %v1829
        %1932 = vmatprep.subr.bf16.mxu0 %v1849
        %1933 = vmatpush1.bf16.msra.mxu0 %v1848
        %1934 = vmatprep.subr.bf16.mxu0 0
        %1935 = vmatpush1.bf16.msra.mxu0 0
        %1936 = vmatprep.subr.bf16.mxu0 0
        %1937 = vmatpush1.bf16.msra.mxu0 0
        %1938 = vmatprep.subr.bf16.mxu0 0
        %1939 = vmatpush1.bf16.msra.mxu0 0
        %1940 = vmatprep.subr.bf16.mxu0 0
        %1941 = vmatpush1.bf16.msra.mxu0 0
        %1942 = vmatprep.subr.bf16.mxu0 0
        %1943 = vmatpush1.bf16.msra.mxu0 0
        %1944 = vmatprep.subr.bf16.mxu0 0
        %1945 = vmatpush1.bf16.msra.mxu0 0
        %1946 = vmatprep.subr.bf16.mxu0 0
        %1947 = vmatpush1.bf16.msra.mxu0 0
        %1948 = vmatprep.subr.bf16.mxu0 0
        %1949 = vmatpush1.bf16.msra.mxu0 0
        %1950 = vmatprep.subr.bf16.mxu0 0
        %1951 = vmatpush1.bf16.msra.mxu0 0
        %1952 = vmatprep.mubr.bf16.mxu0 0
        %1953 = vmatmul.mubr.bf16.gmra.mrb[0].mxu0 %v1875
        %v1954 = vpop.f32.mrb[0].mxu0
        %v1955 = vadd.f32 %v1861, %v1954
        %v1956 = vpop.f32.mrb[0].mxu0
        %v1957 = vadd.f32 %v1861, %v1956
        %v1958 = vpop.f32.mrb[0].mxu0
        %v1959 = vadd.f32 %v1866, %v1958
        %v1960 = vpop.f32.mrb[0].mxu0
        %v1961 = vadd.f32 %v1866, %v1960
        %1962 = vdwg.mxu0
        %v1963 = vld [vmem:[%s7] sm:$0xff]
        %v1964 = vld [vmem:[%s7 + $0x8] sm:$0xff]
        %v1965 = vld [vmem:[%s8] sm:$0xff]
        %v1966 = vld [vmem:[%s8 + $0x8] sm:$0xff]
        %1968 = vset.pattern.permute.xlu0 0
        %1969 = vperm.xlu0 %1968, %v1963
        %v1970 = vpop.permute.xlu0 %1969
        %1973 = vset.pattern.permute.xlu0 0
        %1974 = vperm.xlu0 %1973, %v1964
        %v1975 = vpop.permute.xlu0 %1974
        %v1977 = vmul.f32 %v1970, %v1912
        %v1978 = vmul.f32 %v1970, %v1914
        %v1979 = vmul.f32 %v1970, %v1955
        %v1980 = vmul.f32 %v1970, %v1957
        %v1981 = vmul.f32 %v1975, %v1916
        %v1982 = vmul.f32 %v1975, %v1918
        %v1983 = vmul.f32 %v1975, %v1959
        %v1984 = vmul.f32 %v1975, %v1961
        %v1985 = vand.u32 2147483647, %v1977
        %vm1986 = vcmp.le.f32.partialorder %v1985, 0.7853982
        %vm1987 = vcmp.lt.s32.totalorder %v1977, 0
        %v1988 = vand.u32 %v1977, 2139095040
        %v1989 = vshrl.u32 %v1988, 23
        %v1990 = vsub.s32 %v1989, 127
        %v1991 = vand.u32 2147483647, %v1977
        %v1992 = vand.u32 %v1991, 8388607
        %v1993 = vor.u32 %v1992, 8388608
        %v1994 = vsub.s32 0, %v1993
        %v1995 = vadd.s32 %v1990, 1
        %vm1996 = vcmp.gt.s32.totalorder %v1995, 0
        %v1997 = vsel %vm1996, %v1995, 0
        %v1998 = vshrl.u32 %v1997, 5
        %v1999 = vand.u32 %v1997, 31
        %v2000 = vsub.s32 32, %v1999
        %v2001 = vshrl.u32 683565275, %v2000
        %v2002 = vshll.u32 683565275, %v1999
        %v2003 = vshrl.u32 2475754826, %v2000
        %v2004 = vor.u32 %v2002, %v2003
        %v2005 = vshll.u32 2475754826, %v1999
        %v2006 = vshrl.u32 2131351028, %v2000
        %v2007 = vor.u32 %v2005, %v2006
        %v2008 = vshll.u32 2131351028, %v1999
        %v2009 = vshrl.u32 2102212464, %v2000
        %v2010 = vor.u32 %v2008, %v2009
        %v2011 = vshll.u32 2102212464, %v1999
        %v2012 = vshrl.u32 920167782, %v2000
        %v2013 = vor.u32 %v2011, %v2012
        %v2014 = vshll.u32 920167782, %v1999
        %v2015 = vshrl.u32 1326507024, %v2000
        %v2016 = vor.u32 %v2014, %v2015
        %vm2017 = vcmp.lt.s32.totalorder %v1998, 1
        %vm2018 = vcmp.lt.s32.totalorder %v1998, 2
        %vm2019 = vcmp.lt.s32.totalorder %v1998, 3
        %vm2020 = vcmp.lt.s32.totalorder %v1998, 4
        %v2021 = vsel %vm2017, %v2001, %v2004
        %v2022 = vsel %vm2020, %v2010, 2102212464
        %v2023 = vsel %vm2019, %v2007, %v2022
        %v2024 = vsel %vm2018, %v2021, %v2023
        %v2025 = vsel %vm2017, %v2004, %v2007
        %v2026 = vsel %vm2020, %v2013, 920167782
        %v2027 = vsel %vm2019, %v2010, %v2026
        %v2028 = vsel %vm2018, %v2025, %v2027
        %v2029 = vsel %vm2017, %v2007, %v2010
        %v2030 = vsel %vm2020, %v2016, 1326507024
        %v2031 = vsel %vm2019, %v2013, %v2030
        %v2032 = vsel %vm2018, %v2029, %v2031
        %v2033 = vshll.u32 %v1993, 8
        %v2034 = vmul.u32.u64.compose %v2033, %v2032
        %v2035 = vextract.low.u32 %v2034
        %v2036 = vextract.high.u32 %v2034
        %v2037 = vmul.u32.u64.compose %v2033, %v2028
        %v2038 = vextract.low.u32 %v2037
        %v2039 = vextract.high.u32 %v2037
        %v2040 = vmul.u32 %v2033, %v2024
        %v2041 = vadd.s32 %v2036, %v2038
        %vm2042 = vc.u32 %v2036, %v2038
        %v2043 = vadd.s32 %v2039, 1
        %v2044 = vsel %vm2042, %v2043, %v2039
        %v2045 = vadd.s32 %v2040, %v2044
        %v2046 = vadd.s32 %v2045, 536870912
        %v2047 = vshrl.u32 %v2046, 30
        %v2048 = vshll.u32 %v2047, 30
        %v2049 = vsub.s32 %v2045, %v2048
        %vm2050 = vcmp.lt.s32.totalorder %v2049, 0
        %v2051 = vsub.s32 0, %v2049
        %v2052 = vsel %vm2050, %v2051, %v2049
        %v2053 = vclz %v2052
        %v2054 = vsub.s32 %v2053, 2
        %vm2055 = vcmp.gt.s32.totalorder 0, %v2054
        %v2056 = vsel %vm2055, 0, %v2054
        %v2057 = vsub.s32 32, %v2056
        %v2058 = vshll.u32 %v2049, %v2056
        %v2059 = vshrl.u32 %v2041, %v2057
        %v2060 = vor.u32 %v2058, %v2059
        %v2061 = vsub.s32 4294967266, %v2056
        %v2062 = vadd.s32 %v2061, 127
        %v2063 = vshll.u32 %v2062, 23
        %v2064 = vor.u32 4788187, %v2063
        %v2065 = vand.u32 2147483647, %v2064
        %v2067 = vcvt.s32.f32 %v2060
        %v2068 = vmul.f32 %v2067, %v2065
        %v2069 = vxor.u32 %v2068, 2147483648
        %v2070 = vsel %vm1987, %v2069, %v2068
        %v2071 = vsub.s32 4, %v2047
        %v2072 = vsel %vm1987, %v2071, %v2047
        %v2073 = vsel %vm1986, %v1977, %v2070
        %v2074 = vsel %vm1986, 0, %v2072
        %v2075 = vcosq.f32.pop %v2073
        %v2076 = vsinq.f32.pop %v2073
        %vm2077 = vweird.f32 %v1977
        %v2078 = vadd.s32 %v2074, 3
        %v2079 = vand.u32 %v2078, 3
        %vm2080 = vcmp.lt.s32.totalorder %v2079, 2
        %vm2081 = vcmp.eq.s32.totalorder %v2079, 0
        %v2082 = vxor.u32 %v2076, 2147483648
        %v2083 = vsel %vm2081, %v2075, %v2082
        %vm2084 = vcmp.eq.s32.totalorder %v2079, 2
        %v2085 = vxor.u32 %v2075, 2147483648
        %v2086 = vsel %vm2084, %v2085, %v2076
        %v2087 = vsel %vm2080, %v2083, %v2086
        %v2088 = vsel %vm2077, nan, %v2087
        %v2089 = vand.u32 2147483647, %v1978
        %vm2090 = vcmp.le.f32.partialorder %v2089, 0.7853982
        %vm2091 = vcmp.lt.s32.totalorder %v1978, 0
        %v2092 = vand.u32 %v1978, 2139095040
        %v2093 = vshrl.u32 %v2092, 23
        %v2094 = vsub.s32 %v2093, 127
        %v2095 = vand.u32 2147483647, %v1978
        %v2096 = vand.u32 %v2095, 8388607
        %v2097 = vor.u32 %v2096, 8388608
        %v2098 = vsub.s32 0, %v2097
        %v2099 = vadd.s32 %v2094, 1
        %vm2100 = vcmp.gt.s32.totalorder %v2099, 0
        %v2101 = vsel %vm2100, %v2099, 0
        %v2102 = vshrl.u32 %v2101, 5
        %v2103 = vand.u32 %v2101, 31
        %v2104 = vsub.s32 32, %v2103
        %v2105 = vshrl.u32 683565275, %v2104
        %v2106 = vshll.u32 683565275, %v2103
        %v2107 = vshrl.u32 2475754826, %v2104
        %v2108 = vor.u32 %v2106, %v2107
        %v2109 = vshll.u32 2475754826, %v2103
        %v2110 = vshrl.u32 2131351028, %v2104
        %v2111 = vor.u32 %v2109, %v2110
        %v2112 = vshll.u32 2131351028, %v2103
        %v2113 = vshrl.u32 2102212464, %v2104
        %v2114 = vor.u32 %v2112, %v2113
        %v2115 = vshll.u32 2102212464, %v2103
        %v2116 = vshrl.u32 920167782, %v2104
        %v2117 = vor.u32 %v2115, %v2116
        %v2118 = vshll.u32 920167782, %v2103
        %v2119 = vshrl.u32 1326507024, %v2104
        %v2120 = vor.u32 %v2118, %v2119
        %vm2121 = vcmp.lt.s32.totalorder %v2102, 1
        %vm2122 = vcmp.lt.s32.totalorder %v2102, 2
        %vm2123 = vcmp.lt.s32.totalorder %v2102, 3
        %vm2124 = vcmp.lt.s32.totalorder %v2102, 4
        %v2125 = vsel %vm2121, %v2105, %v2108
        %v2126 = vsel %vm2124, %v2114, 2102212464
        %v2127 = vsel %vm2123, %v2111, %v2126
        %v2128 = vsel %vm2122, %v2125, %v2127
        %v2129 = vsel %vm2121, %v2108, %v2111
        %v2130 = vsel %vm2124, %v2117, 920167782
        %v2131 = vsel %vm2123, %v2114, %v2130
        %v2132 = vsel %vm2122, %v2129, %v2131
        %v2133 = vsel %vm2121, %v2111, %v2114
        %v2134 = vsel %vm2124, %v2120, 1326507024
        %v2135 = vsel %vm2123, %v2117, %v2134
        %v2136 = vsel %vm2122, %v2133, %v2135
        %v2137 = vshll.u32 %v2097, 8
        %v2138 = vmul.u32.u64.compose %v2137, %v2136
        %v2139 = vextract.low.u32 %v2138
        %v2140 = vextract.high.u32 %v2138
        %v2141 = vmul.u32.u64.compose %v2137, %v2132
        %v2142 = vextract.low.u32 %v2141
        %v2143 = vextract.high.u32 %v2141
        %v2144 = vmul.u32 %v2137, %v2128
        %v2145 = vadd.s32 %v2140, %v2142
        %vm2146 = vc.u32 %v2140, %v2142
        %v2147 = vadd.s32 %v2143, 1
        %v2148 = vsel %vm2146, %v2147, %v2143
        %v2149 = vadd.s32 %v2144, %v2148
        %v2150 = vadd.s32 %v2149, 536870912
        %v2151 = vshrl.u32 %v2150, 30
        %v2152 = vshll.u32 %v2151, 30
        %v2153 = vsub.s32 %v2149, %v2152
        %vm2154 = vcmp.lt.s32.totalorder %v2153, 0
        %v2155 = vsub.s32 0, %v2153
        %v2156 = vsel %vm2154, %v2155, %v2153
        %v2157 = vclz %v2156
        %v2158 = vsub.s32 %v2157, 2
        %vm2159 = vcmp.gt.s32.totalorder 0, %v2158
        %v2160 = vsel %vm2159, 0, %v2158
        %v2161 = vsub.s32 32, %v2160
        %v2162 = vshll.u32 %v2153, %v2160
        %v2163 = vshrl.u32 %v2145, %v2161
        %v2164 = vor.u32 %v2162, %v2163
        %v2165 = vsub.s32 4294967266, %v2160
        %v2166 = vadd.s32 %v2165, 127
        %v2167 = vshll.u32 %v2166, 23
        %v2168 = vor.u32 4788187, %v2167
        %v2169 = vand.u32 2147483647, %v2168
        %v2171 = vcvt.s32.f32 %v2164
        %v2172 = vmul.f32 %v2171, %v2169
        %v2173 = vxor.u32 %v2172, 2147483648
        %v2174 = vsel %vm2091, %v2173, %v2172
        %v2175 = vsub.s32 4, %v2151
        %v2176 = vsel %vm2091, %v2175, %v2151
        %v2177 = vsel %vm2090, %v1978, %v2174
        %v2178 = vsel %vm2090, 0, %v2176
        %v2179 = vcosq.f32.pop %v2177
        %v2180 = vsinq.f32.pop %v2177
        %vm2181 = vweird.f32 %v1978
        %v2182 = vadd.s32 %v2178, 3
        %v2183 = vand.u32 %v2182, 3
        %vm2184 = vcmp.lt.s32.totalorder %v2183, 2
        %vm2185 = vcmp.eq.s32.totalorder %v2183, 0
        %v2186 = vxor.u32 %v2180, 2147483648
        %v2187 = vsel %vm2185, %v2179, %v2186
        %vm2188 = vcmp.eq.s32.totalorder %v2183, 2
        %v2189 = vxor.u32 %v2179, 2147483648
        %v2190 = vsel %vm2188, %v2189, %v2180
        %v2191 = vsel %vm2184, %v2187, %v2190
        %v2192 = vsel %vm2181, nan, %v2191
        %v2193 = vand.u32 2147483647, %v1979
        %vm2194 = vcmp.le.f32.partialorder %v2193, 0.7853982
        %vm2195 = vcmp.lt.s32.totalorder %v1979, 0
        %v2196 = vand.u32 %v1979, 2139095040
        %v2197 = vshrl.u32 %v2196, 23
        %v2198 = vsub.s32 %v2197, 127
        %v2199 = vand.u32 2147483647, %v1979
        %v2200 = vand.u32 %v2199, 8388607
        %v2201 = vor.u32 %v2200, 8388608
        %v2202 = vsub.s32 0, %v2201
        %v2203 = vadd.s32 %v2198, 1
        %vm2204 = vcmp.gt.s32.totalorder %v2203, 0
        %v2205 = vsel %vm2204, %v2203, 0
        %v2206 = vshrl.u32 %v2205, 5
        %v2207 = vand.u32 %v2205, 31
        %v2208 = vsub.s32 32, %v2207
        %v2209 = vshrl.u32 683565275, %v2208
        %v2210 = vshll.u32 683565275, %v2207
        %v2211 = vshrl.u32 2475754826, %v2208
        %v2212 = vor.u32 %v2210, %v2211
        %v2213 = vshll.u32 2475754826, %v2207
        %v2214 = vshrl.u32 2131351028, %v2208
        %v2215 = vor.u32 %v2213, %v2214
        %v2216 = vshll.u32 2131351028, %v2207
        %v2217 = vshrl.u32 2102212464, %v2208
        %v2218 = vor.u32 %v2216, %v2217
        %v2219 = vshll.u32 2102212464, %v2207
        %v2220 = vshrl.u32 920167782, %v2208
        %v2221 = vor.u32 %v2219, %v2220
        %v2222 = vshll.u32 920167782, %v2207
        %v2223 = vshrl.u32 1326507024, %v2208
        %v2224 = vor.u32 %v2222, %v2223
        %vm2225 = vcmp.lt.s32.totalorder %v2206, 1
        %vm2226 = vcmp.lt.s32.totalorder %v2206, 2
        %vm2227 = vcmp.lt.s32.totalorder %v2206, 3
        %vm2228 = vcmp.lt.s32.totalorder %v2206, 4
        %v2229 = vsel %vm2225, %v2209, %v2212
        %v2230 = vsel %vm2228, %v2218, 2102212464
        %v2231 = vsel %vm2227, %v2215, %v2230
        %v2232 = vsel %vm2226, %v2229, %v2231
        %v2233 = vsel %vm2225, %v2212, %v2215
        %v2234 = vsel %vm2228, %v2221, 920167782
        %v2235 = vsel %vm2227, %v2218, %v2234
        %v2236 = vsel %vm2226, %v2233, %v2235
        %v2237 = vsel %vm2225, %v2215, %v2218
        %v2238 = vsel %vm2228, %v2224, 1326507024
        %v2239 = vsel %vm2227, %v2221, %v2238
        %v2240 = vsel %vm2226, %v2237, %v2239
        %v2241 = vshll.u32 %v2201, 8
        %v2242 = vmul.u32.u64.compose %v2241, %v2240
        %v2243 = vextract.low.u32 %v2242
        %v2244 = vextract.high.u32 %v2242
        %v2245 = vmul.u32.u64.compose %v2241, %v2236
        %v2246 = vextract.low.u32 %v2245
        %v2247 = vextract.high.u32 %v2245
        %v2248 = vmul.u32 %v2241, %v2232
        %v2249 = vadd.s32 %v2244, %v2246
        %vm2250 = vc.u32 %v2244, %v2246
        %v2251 = vadd.s32 %v2247, 1
        %v2252 = vsel %vm2250, %v2251, %v2247
        %v2253 = vadd.s32 %v2248, %v2252
        %v2254 = vadd.s32 %v2253, 536870912
        %v2255 = vshrl.u32 %v2254, 30
        %v2256 = vshll.u32 %v2255, 30
        %v2257 = vsub.s32 %v2253, %v2256
        %vm2258 = vcmp.lt.s32.totalorder %v2257, 0
        %v2259 = vsub.s32 0, %v2257
        %v2260 = vsel %vm2258, %v2259, %v2257
        %v2261 = vclz %v2260
        %v2262 = vsub.s32 %v2261, 2
        %vm2263 = vcmp.gt.s32.totalorder 0, %v2262
        %v2264 = vsel %vm2263, 0, %v2262
        %v2265 = vsub.s32 32, %v2264
        %v2266 = vshll.u32 %v2257, %v2264
        %v2267 = vshrl.u32 %v2249, %v2265
        %v2268 = vor.u32 %v2266, %v2267
        %v2269 = vsub.s32 4294967266, %v2264
        %v2270 = vadd.s32 %v2269, 127
        %v2271 = vshll.u32 %v2270, 23
        %v2272 = vor.u32 4788187, %v2271
        %v2273 = vand.u32 2147483647, %v2272
        %v2275 = vcvt.s32.f32 %v2268
        %v2276 = vmul.f32 %v2275, %v2273
        %v2277 = vxor.u32 %v2276, 2147483648
        %v2278 = vsel %vm2195, %v2277, %v2276
        %v2279 = vsub.s32 4, %v2255
        %v2280 = vsel %vm2195, %v2279, %v2255
        %v2281 = vsel %vm2194, %v1979, %v2278
        %v2282 = vsel %vm2194, 0, %v2280
        %v2283 = vcosq.f32.pop %v2281
        %v2284 = vsinq.f32.pop %v2281
        %vm2285 = vweird.f32 %v1979
        %v2286 = vadd.s32 %v2282, 3
        %v2287 = vand.u32 %v2286, 3
        %vm2288 = vcmp.lt.s32.totalorder %v2287, 2
        %vm2289 = vcmp.eq.s32.totalorder %v2287, 0
        %v2290 = vxor.u32 %v2284, 2147483648
        %v2291 = vsel %vm2289, %v2283, %v2290
        %vm2292 = vcmp.eq.s32.totalorder %v2287, 2
        %v2293 = vxor.u32 %v2283, 2147483648
        %v2294 = vsel %vm2292, %v2293, %v2284
        %v2295 = vsel %vm2288, %v2291, %v2294
        %v2296 = vsel %vm2285, nan, %v2295
        %v2297 = vand.u32 2147483647, %v1980
        %vm2298 = vcmp.le.f32.partialorder %v2297, 0.7853982
        %vm2299 = vcmp.lt.s32.totalorder %v1980, 0
        %v2300 = vand.u32 %v1980, 2139095040
        %v2301 = vshrl.u32 %v2300, 23
        %v2302 = vsub.s32 %v2301, 127
        %v2303 = vand.u32 2147483647, %v1980
        %v2304 = vand.u32 %v2303, 8388607
        %v2305 = vor.u32 %v2304, 8388608
        %v2306 = vsub.s32 0, %v2305
        %v2307 = vadd.s32 %v2302, 1
        %vm2308 = vcmp.gt.s32.totalorder %v2307, 0
        %v2309 = vsel %vm2308, %v2307, 0
        %v2310 = vshrl.u32 %v2309, 5
        %v2311 = vand.u32 %v2309, 31
        %v2312 = vsub.s32 32, %v2311
        %v2313 = vshrl.u32 683565275, %v2312
        %v2314 = vshll.u32 683565275, %v2311
        %v2315 = vshrl.u32 2475754826, %v2312
        %v2316 = vor.u32 %v2314, %v2315
        %v2317 = vshll.u32 2475754826, %v2311
        %v2318 = vshrl.u32 2131351028, %v2312
        %v2319 = vor.u32 %v2317, %v2318
        %v2320 = vshll.u32 2131351028, %v2311
        %v2321 = vshrl.u32 2102212464, %v2312
        %v2322 = vor.u32 %v2320, %v2321
        %v2323 = vshll.u32 2102212464, %v2311
        %v2324 = vshrl.u32 920167782, %v2312
        %v2325 = vor.u32 %v2323, %v2324
        %v2326 = vshll.u32 920167782, %v2311
        %v2327 = vshrl.u32 1326507024, %v2312
        %v2328 = vor.u32 %v2326, %v2327
        %vm2329 = vcmp.lt.s32.totalorder %v2310, 1
        %vm2330 = vcmp.lt.s32.totalorder %v2310, 2
        %vm2331 = vcmp.lt.s32.totalorder %v2310, 3
        %vm2332 = vcmp.lt.s32.totalorder %v2310, 4
        %v2333 = vsel %vm2329, %v2313, %v2316
        %v2334 = vsel %vm2332, %v2322, 2102212464
        %v2335 = vsel %vm2331, %v2319, %v2334
        %v2336 = vsel %vm2330, %v2333, %v2335
        %v2337 = vsel %vm2329, %v2316, %v2319
        %v2338 = vsel %vm2332, %v2325, 920167782
        %v2339 = vsel %vm2331, %v2322, %v2338
        %v2340 = vsel %vm2330, %v2337, %v2339
        %v2341 = vsel %vm2329, %v2319, %v2322
        %v2342 = vsel %vm2332, %v2328, 1326507024
        %v2343 = vsel %vm2331, %v2325, %v2342
        %v2344 = vsel %vm2330, %v2341, %v2343
        %v2345 = vshll.u32 %v2305, 8
        %v2346 = vmul.u32.u64.compose %v2345, %v2344
        %v2347 = vextract.low.u32 %v2346
        %v2348 = vextract.high.u32 %v2346
        %v2349 = vmul.u32.u64.compose %v2345, %v2340
        %v2350 = vextract.low.u32 %v2349
        %v2351 = vextract.high.u32 %v2349
        %v2352 = vmul.u32 %v2345, %v2336
        %v2353 = vadd.s32 %v2348, %v2350
        %vm2354 = vc.u32 %v2348, %v2350
        %v2355 = vadd.s32 %v2351, 1
        %v2356 = vsel %vm2354, %v2355, %v2351
        %v2357 = vadd.s32 %v2352, %v2356
        %v2358 = vadd.s32 %v2357, 536870912
        %v2359 = vshrl.u32 %v2358, 30
        %v2360 = vshll.u32 %v2359, 30
        %v2361 = vsub.s32 %v2357, %v2360
        %vm2362 = vcmp.lt.s32.totalorder %v2361, 0
        %v2363 = vsub.s32 0, %v2361
        %v2364 = vsel %vm2362, %v2363, %v2361
        %v2365 = vclz %v2364
        %v2366 = vsub.s32 %v2365, 2
        %vm2367 = vcmp.gt.s32.totalorder 0, %v2366
        %v2368 = vsel %vm2367, 0, %v2366
        %v2369 = vsub.s32 32, %v2368
        %v2370 = vshll.u32 %v2361, %v2368
        %v2371 = vshrl.u32 %v2353, %v2369
        %v2372 = vor.u32 %v2370, %v2371
        %v2373 = vsub.s32 4294967266, %v2368
        %v2374 = vadd.s32 %v2373, 127
        %v2375 = vshll.u32 %v2374, 23
        %v2376 = vor.u32 4788187, %v2375
        %v2377 = vand.u32 2147483647, %v2376
        %v2379 = vcvt.s32.f32 %v2372
        %v2380 = vmul.f32 %v2379, %v2377
        %v2381 = vxor.u32 %v2380, 2147483648
        %v2382 = vsel %vm2299, %v2381, %v2380
        %v2383 = vsub.s32 4, %v2359
        %v2384 = vsel %vm2299, %v2383, %v2359
        %v2385 = vsel %vm2298, %v1980, %v2382
        %v2386 = vsel %vm2298, 0, %v2384
        %v2387 = vcosq.f32.pop %v2385
        %v2388 = vsinq.f32.pop %v2385
        %vm2389 = vweird.f32 %v1980
        %v2390 = vadd.s32 %v2386, 3
        %v2391 = vand.u32 %v2390, 3
        %vm2392 = vcmp.lt.s32.totalorder %v2391, 2
        %vm2393 = vcmp.eq.s32.totalorder %v2391, 0
        %v2394 = vxor.u32 %v2388, 2147483648
        %v2395 = vsel %vm2393, %v2387, %v2394
        %vm2396 = vcmp.eq.s32.totalorder %v2391, 2
        %v2397 = vxor.u32 %v2387, 2147483648
        %v2398 = vsel %vm2396, %v2397, %v2388
        %v2399 = vsel %vm2392, %v2395, %v2398
        %v2400 = vsel %vm2389, nan, %v2399
        %v2401 = vand.u32 2147483647, %v1981
        %vm2402 = vcmp.le.f32.partialorder %v2401, 0.7853982
        %vm2403 = vcmp.lt.s32.totalorder %v1981, 0
        %v2404 = vand.u32 %v1981, 2139095040
        %v2405 = vshrl.u32 %v2404, 23
        %v2406 = vsub.s32 %v2405, 127
        %v2407 = vand.u32 2147483647, %v1981
        %v2408 = vand.u32 %v2407, 8388607
        %v2409 = vor.u32 %v2408, 8388608
        %v2410 = vsub.s32 0, %v2409
        %v2411 = vadd.s32 %v2406, 1
        %vm2412 = vcmp.gt.s32.totalorder %v2411, 0
        %v2413 = vsel %vm2412, %v2411, 0
        %v2414 = vshrl.u32 %v2413, 5
        %v2415 = vand.u32 %v2413, 31
        %v2416 = vsub.s32 32, %v2415
        %v2417 = vshrl.u32 683565275, %v2416
        %v2418 = vshll.u32 683565275, %v2415
        %v2419 = vshrl.u32 2475754826, %v2416
        %v2420 = vor.u32 %v2418, %v2419
        %v2421 = vshll.u32 2475754826, %v2415
        %v2422 = vshrl.u32 2131351028, %v2416
        %v2423 = vor.u32 %v2421, %v2422
        %v2424 = vshll.u32 2131351028, %v2415
        %v2425 = vshrl.u32 2102212464, %v2416
        %v2426 = vor.u32 %v2424, %v2425
        %v2427 = vshll.u32 2102212464, %v2415
        %v2428 = vshrl.u32 920167782, %v2416
        %v2429 = vor.u32 %v2427, %v2428
        %v2430 = vshll.u32 920167782, %v2415
        %v2431 = vshrl.u32 1326507024, %v2416
        %v2432 = vor.u32 %v2430, %v2431
        %vm2433 = vcmp.lt.s32.totalorder %v2414, 1
        %vm2434 = vcmp.lt.s32.totalorder %v2414, 2
        %vm2435 = vcmp.lt.s32.totalorder %v2414, 3
        %vm2436 = vcmp.lt.s32.totalorder %v2414, 4
        %v2437 = vsel %vm2433, %v2417, %v2420
        %v2438 = vsel %vm2436, %v2426, 2102212464
        %v2439 = vsel %vm2435, %v2423, %v2438
        %v2440 = vsel %vm2434, %v2437, %v2439
        %v2441 = vsel %vm2433, %v2420, %v2423
        %v2442 = vsel %vm2436, %v2429, 920167782
        %v2443 = vsel %vm2435, %v2426, %v2442
        %v2444 = vsel %vm2434, %v2441, %v2443
        %v2445 = vsel %vm2433, %v2423, %v2426
        %v2446 = vsel %vm2436, %v2432, 1326507024
        %v2447 = vsel %vm2435, %v2429, %v2446
        %v2448 = vsel %vm2434, %v2445, %v2447
        %v2449 = vshll.u32 %v2409, 8
        %v2450 = vmul.u32.u64.compose %v2449, %v2448
        %v2451 = vextract.low.u32 %v2450
        %v2452 = vextract.high.u32 %v2450
        %v2453 = vmul.u32.u64.compose %v2449, %v2444
        %v2454 = vextract.low.u32 %v2453
        %v2455 = vextract.high.u32 %v2453
        %v2456 = vmul.u32 %v2449, %v2440
        %v2457 = vadd.s32 %v2452, %v2454
        %vm2458 = vc.u32 %v2452, %v2454
        %v2459 = vadd.s32 %v2455, 1
        %v2460 = vsel %vm2458, %v2459, %v2455
        %v2461 = vadd.s32 %v2456, %v2460
        %v2462 = vadd.s32 %v2461, 536870912
        %v2463 = vshrl.u32 %v2462, 30
        %v2464 = vshll.u32 %v2463, 30
        %v2465 = vsub.s32 %v2461, %v2464
        %vm2466 = vcmp.lt.s32.totalorder %v2465, 0
        %v2467 = vsub.s32 0, %v2465
        %v2468 = vsel %vm2466, %v2467, %v2465
        %v2469 = vclz %v2468
        %v2470 = vsub.s32 %v2469, 2
        %vm2471 = vcmp.gt.s32.totalorder 0, %v2470
        %v2472 = vsel %vm2471, 0, %v2470
        %v2473 = vsub.s32 32, %v2472
        %v2474 = vshll.u32 %v2465, %v2472
        %v2475 = vshrl.u32 %v2457, %v2473
        %v2476 = vor.u32 %v2474, %v2475
        %v2477 = vsub.s32 4294967266, %v2472
        %v2478 = vadd.s32 %v2477, 127
        %v2479 = vshll.u32 %v2478, 23
        %v2480 = vor.u32 4788187, %v2479
        %v2481 = vand.u32 2147483647, %v2480
        %v2483 = vcvt.s32.f32 %v2476
        %v2484 = vmul.f32 %v2483, %v2481
        %v2485 = vxor.u32 %v2484, 2147483648
        %v2486 = vsel %vm2403, %v2485, %v2484
        %v2487 = vsub.s32 4, %v2463
        %v2488 = vsel %vm2403, %v2487, %v2463
        %v2489 = vsel %vm2402, %v1981, %v2486
        %v2490 = vsel %vm2402, 0, %v2488
        %v2491 = vcosq.f32.pop %v2489
        %v2492 = vsinq.f32.pop %v2489
        %vm2493 = vweird.f32 %v1981
        %v2494 = vadd.s32 %v2490, 3
        %v2495 = vand.u32 %v2494, 3
        %vm2496 = vcmp.lt.s32.totalorder %v2495, 2
        %vm2497 = vcmp.eq.s32.totalorder %v2495, 0
        %v2498 = vxor.u32 %v2492, 2147483648
        %v2499 = vsel %vm2497, %v2491, %v2498
        %vm2500 = vcmp.eq.s32.totalorder %v2495, 2
        %v2501 = vxor.u32 %v2491, 2147483648
        %v2502 = vsel %vm2500, %v2501, %v2492
        %v2503 = vsel %vm2496, %v2499, %v2502
        %v2504 = vsel %vm2493, nan, %v2503
        %v2505 = vand.u32 2147483647, %v1982
        %vm2506 = vcmp.le.f32.partialorder %v2505, 0.7853982
        %vm2507 = vcmp.lt.s32.totalorder %v1982, 0
        %v2508 = vand.u32 %v1982, 2139095040
        %v2509 = vshrl.u32 %v2508, 23
        %v2510 = vsub.s32 %v2509, 127
        %v2511 = vand.u32 2147483647, %v1982
        %v2512 = vand.u32 %v2511, 8388607
        %v2513 = vor.u32 %v2512, 8388608
        %v2514 = vsub.s32 0, %v2513
        %v2515 = vadd.s32 %v2510, 1
        %vm2516 = vcmp.gt.s32.totalorder %v2515, 0
        %v2517 = vsel %vm2516, %v2515, 0
        %v2518 = vshrl.u32 %v2517, 5
        %v2519 = vand.u32 %v2517, 31
        %v2520 = vsub.s32 32, %v2519
        %v2521 = vshrl.u32 683565275, %v2520
        %v2522 = vshll.u32 683565275, %v2519
        %v2523 = vshrl.u32 2475754826, %v2520
        %v2524 = vor.u32 %v2522, %v2523
        %v2525 = vshll.u32 2475754826, %v2519
        %v2526 = vshrl.u32 2131351028, %v2520
        %v2527 = vor.u32 %v2525, %v2526
        %v2528 = vshll.u32 2131351028, %v2519
        %v2529 = vshrl.u32 2102212464, %v2520
        %v2530 = vor.u32 %v2528, %v2529
        %v2531 = vshll.u32 2102212464, %v2519
        %v2532 = vshrl.u32 920167782, %v2520
        %v2533 = vor.u32 %v2531, %v2532
        %v2534 = vshll.u32 920167782, %v2519
        %v2535 = vshrl.u32 1326507024, %v2520
        %v2536 = vor.u32 %v2534, %v2535
        %vm2537 = vcmp.lt.s32.totalorder %v2518, 1
        %vm2538 = vcmp.lt.s32.totalorder %v2518, 2
        %vm2539 = vcmp.lt.s32.totalorder %v2518, 3
        %vm2540 = vcmp.lt.s32.totalorder %v2518, 4
        %v2541 = vsel %vm2537, %v2521, %v2524
        %v2542 = vsel %vm2540, %v2530, 2102212464
        %v2543 = vsel %vm2539, %v2527, %v2542
        %v2544 = vsel %vm2538, %v2541, %v2543
        %v2545 = vsel %vm2537, %v2524, %v2527
        %v2546 = vsel %vm2540, %v2533, 920167782
        %v2547 = vsel %vm2539, %v2530, %v2546
        %v2548 = vsel %vm2538, %v2545, %v2547
        %v2549 = vsel %vm2537, %v2527, %v2530
        %v2550 = vsel %vm2540, %v2536, 1326507024
        %v2551 = vsel %vm2539, %v2533, %v2550
        %v2552 = vsel %vm2538, %v2549, %v2551
        %v2553 = vshll.u32 %v2513, 8
        %v2554 = vmul.u32.u64.compose %v2553, %v2552
        %v2555 = vextract.low.u32 %v2554
        %v2556 = vextract.high.u32 %v2554
        %v2557 = vmul.u32.u64.compose %v2553, %v2548
        %v2558 = vextract.low.u32 %v2557
        %v2559 = vextract.high.u32 %v2557
        %v2560 = vmul.u32 %v2553, %v2544
        %v2561 = vadd.s32 %v2556, %v2558
        %vm2562 = vc.u32 %v2556, %v2558
        %v2563 = vadd.s32 %v2559, 1
        %v2564 = vsel %vm2562, %v2563, %v2559
        %v2565 = vadd.s32 %v2560, %v2564
        %v2566 = vadd.s32 %v2565, 536870912
        %v2567 = vshrl.u32 %v2566, 30
        %v2568 = vshll.u32 %v2567, 30
        %v2569 = vsub.s32 %v2565, %v2568
        %vm2570 = vcmp.lt.s32.totalorder %v2569, 0
        %v2571 = vsub.s32 0, %v2569
        %v2572 = vsel %vm2570, %v2571, %v2569
        %v2573 = vclz %v2572
        %v2574 = vsub.s32 %v2573, 2
        %vm2575 = vcmp.gt.s32.totalorder 0, %v2574
        %v2576 = vsel %vm2575, 0, %v2574
        %v2577 = vsub.s32 32, %v2576
        %v2578 = vshll.u32 %v2569, %v2576
        %v2579 = vshrl.u32 %v2561, %v2577
        %v2580 = vor.u32 %v2578, %v2579
        %v2581 = vsub.s32 4294967266, %v2576
        %v2582 = vadd.s32 %v2581, 127
        %v2583 = vshll.u32 %v2582, 23
        %v2584 = vor.u32 4788187, %v2583
        %v2585 = vand.u32 2147483647, %v2584
        %v2587 = vcvt.s32.f32 %v2580
        %v2588 = vmul.f32 %v2587, %v2585
        %v2589 = vxor.u32 %v2588, 2147483648
        %v2590 = vsel %vm2507, %v2589, %v2588
        %v2591 = vsub.s32 4, %v2567
        %v2592 = vsel %vm2507, %v2591, %v2567
        %v2593 = vsel %vm2506, %v1982, %v2590
        %v2594 = vsel %vm2506, 0, %v2592
        %v2595 = vcosq.f32.pop %v2593
        %v2596 = vsinq.f32.pop %v2593
        %vm2597 = vweird.f32 %v1982
        %v2598 = vadd.s32 %v2594, 3
        %v2599 = vand.u32 %v2598, 3
        %vm2600 = vcmp.lt.s32.totalorder %v2599, 2
        %vm2601 = vcmp.eq.s32.totalorder %v2599, 0
        %v2602 = vxor.u32 %v2596, 2147483648
        %v2603 = vsel %vm2601, %v2595, %v2602
        %vm2604 = vcmp.eq.s32.totalorder %v2599, 2
        %v2605 = vxor.u32 %v2595, 2147483648
        %v2606 = vsel %vm2604, %v2605, %v2596
        %v2607 = vsel %vm2600, %v2603, %v2606
        %v2608 = vsel %vm2597, nan, %v2607
        %v2609 = vand.u32 2147483647, %v1983
        %vm2610 = vcmp.le.f32.partialorder %v2609, 0.7853982
        %vm2611 = vcmp.lt.s32.totalorder %v1983, 0
        %v2612 = vand.u32 %v1983, 2139095040
        %v2613 = vshrl.u32 %v2612, 23
        %v2614 = vsub.s32 %v2613, 127
        %v2615 = vand.u32 2147483647, %v1983
        %v2616 = vand.u32 %v2615, 8388607
        %v2617 = vor.u32 %v2616, 8388608
        %v2618 = vsub.s32 0, %v2617
        %v2619 = vadd.s32 %v2614, 1
        %vm2620 = vcmp.gt.s32.totalorder %v2619, 0
        %v2621 = vsel %vm2620, %v2619, 0
        %v2622 = vshrl.u32 %v2621, 5
        %v2623 = vand.u32 %v2621, 31
        %v2624 = vsub.s32 32, %v2623
        %v2625 = vshrl.u32 683565275, %v2624
        %v2626 = vshll.u32 683565275, %v2623
        %v2627 = vshrl.u32 2475754826, %v2624
        %v2628 = vor.u32 %v2626, %v2627
        %v2629 = vshll.u32 2475754826, %v2623
        %v2630 = vshrl.u32 2131351028, %v2624
        %v2631 = vor.u32 %v2629, %v2630
        %v2632 = vshll.u32 2131351028, %v2623
        %v2633 = vshrl.u32 2102212464, %v2624
        %v2634 = vor.u32 %v2632, %v2633
        %v2635 = vshll.u32 2102212464, %v2623
        %v2636 = vshrl.u32 920167782, %v2624
        %v2637 = vor.u32 %v2635, %v2636
        %v2638 = vshll.u32 920167782, %v2623
        %v2639 = vshrl.u32 1326507024, %v2624
        %v2640 = vor.u32 %v2638, %v2639
        %vm2641 = vcmp.lt.s32.totalorder %v2622, 1
        %vm2642 = vcmp.lt.s32.totalorder %v2622, 2
        %vm2643 = vcmp.lt.s32.totalorder %v2622, 3
        %vm2644 = vcmp.lt.s32.totalorder %v2622, 4
        %v2645 = vsel %vm2641, %v2625, %v2628
        %v2646 = vsel %vm2644, %v2634, 2102212464
        %v2647 = vsel %vm2643, %v2631, %v2646
        %v2648 = vsel %vm2642, %v2645, %v2647
        %v2649 = vsel %vm2641, %v2628, %v2631
        %v2650 = vsel %vm2644, %v2637, 920167782
        %v2651 = vsel %vm2643, %v2634, %v2650
        %v2652 = vsel %vm2642, %v2649, %v2651
        %v2653 = vsel %vm2641, %v2631, %v2634
        %v2654 = vsel %vm2644, %v2640, 1326507024
        %v2655 = vsel %vm2643, %v2637, %v2654
        %v2656 = vsel %vm2642, %v2653, %v2655
        %v2657 = vshll.u32 %v2617, 8
        %v2658 = vmul.u32.u64.compose %v2657, %v2656
        %v2659 = vextract.low.u32 %v2658
        %v2660 = vextract.high.u32 %v2658
        %v2661 = vmul.u32.u64.compose %v2657, %v2652
        %v2662 = vextract.low.u32 %v2661
        %v2663 = vextract.high.u32 %v2661
        %v2664 = vmul.u32 %v2657, %v2648
        %v2665 = vadd.s32 %v2660, %v2662
        %vm2666 = vc.u32 %v2660, %v2662
        %v2667 = vadd.s32 %v2663, 1
        %v2668 = vsel %vm2666, %v2667, %v2663
        %v2669 = vadd.s32 %v2664, %v2668
        %v2670 = vadd.s32 %v2669, 536870912
        %v2671 = vshrl.u32 %v2670, 30
        %v2672 = vshll.u32 %v2671, 30
        %v2673 = vsub.s32 %v2669, %v2672
        %vm2674 = vcmp.lt.s32.totalorder %v2673, 0
        %v2675 = vsub.s32 0, %v2673
        %v2676 = vsel %vm2674, %v2675, %v2673
        %v2677 = vclz %v2676
        %v2678 = vsub.s32 %v2677, 2
        %vm2679 = vcmp.gt.s32.totalorder 0, %v2678
        %v2680 = vsel %vm2679, 0, %v2678
        %v2681 = vsub.s32 32, %v2680
        %v2682 = vshll.u32 %v2673, %v2680
        %v2683 = vshrl.u32 %v2665, %v2681
        %v2684 = vor.u32 %v2682, %v2683
        %v2685 = vsub.s32 4294967266, %v2680
        %v2686 = vadd.s32 %v2685, 127
        %v2687 = vshll.u32 %v2686, 23
        %v2688 = vor.u32 4788187, %v2687
        %v2689 = vand.u32 2147483647, %v2688
        %v2691 = vcvt.s32.f32 %v2684
        %v2692 = vmul.f32 %v2691, %v2689
        %v2693 = vxor.u32 %v2692, 2147483648
        %v2694 = vsel %vm2611, %v2693, %v2692
        %v2695 = vsub.s32 4, %v2671
        %v2696 = vsel %vm2611, %v2695, %v2671
        %v2697 = vsel %vm2610, %v1983, %v2694
        %v2698 = vsel %vm2610, 0, %v2696
        %v2699 = vcosq.f32.pop %v2697
        %v2700 = vsinq.f32.pop %v2697
        %vm2701 = vweird.f32 %v1983
        %v2702 = vadd.s32 %v2698, 3
        %v2703 = vand.u32 %v2702, 3
        %vm2704 = vcmp.lt.s32.totalorder %v2703, 2
        %vm2705 = vcmp.eq.s32.totalorder %v2703, 0
        %v2706 = vxor.u32 %v2700, 2147483648
        %v2707 = vsel %vm2705, %v2699, %v2706
        %vm2708 = vcmp.eq.s32.totalorder %v2703, 2
        %v2709 = vxor.u32 %v2699, 2147483648
        %v2710 = vsel %vm2708, %v2709, %v2700
        %v2711 = vsel %vm2704, %v2707, %v2710
        %v2712 = vsel %vm2701, nan, %v2711
        %v2713 = vand.u32 2147483647, %v1984
        %vm2714 = vcmp.le.f32.partialorder %v2713, 0.7853982
        %vm2715 = vcmp.lt.s32.totalorder %v1984, 0
        %v2716 = vand.u32 %v1984, 2139095040
        %v2717 = vshrl.u32 %v2716, 23
        %v2718 = vsub.s32 %v2717, 127
        %v2719 = vand.u32 2147483647, %v1984
        %v2720 = vand.u32 %v2719, 8388607
        %v2721 = vor.u32 %v2720, 8388608
        %v2722 = vsub.s32 0, %v2721
        %v2723 = vadd.s32 %v2718, 1
        %vm2724 = vcmp.gt.s32.totalorder %v2723, 0
        %v2725 = vsel %vm2724, %v2723, 0
        %v2726 = vshrl.u32 %v2725, 5
        %v2727 = vand.u32 %v2725, 31
        %v2728 = vsub.s32 32, %v2727
        %v2729 = vshrl.u32 683565275, %v2728
        %v2730 = vshll.u32 683565275, %v2727
        %v2731 = vshrl.u32 2475754826, %v2728
        %v2732 = vor.u32 %v2730, %v2731
        %v2733 = vshll.u32 2475754826, %v2727
        %v2734 = vshrl.u32 2131351028, %v2728
        %v2735 = vor.u32 %v2733, %v2734
        %v2736 = vshll.u32 2131351028, %v2727
        %v2737 = vshrl.u32 2102212464, %v2728
        %v2738 = vor.u32 %v2736, %v2737
        %v2739 = vshll.u32 2102212464, %v2727
        %v2740 = vshrl.u32 920167782, %v2728
        %v2741 = vor.u32 %v2739, %v2740
        %v2742 = vshll.u32 920167782, %v2727
        %v2743 = vshrl.u32 1326507024, %v2728
        %v2744 = vor.u32 %v2742, %v2743
        %vm2745 = vcmp.lt.s32.totalorder %v2726, 1
        %vm2746 = vcmp.lt.s32.totalorder %v2726, 2
        %vm2747 = vcmp.lt.s32.totalorder %v2726, 3
        %vm2748 = vcmp.lt.s32.totalorder %v2726, 4
        %v2749 = vsel %vm2745, %v2729, %v2732
        %v2750 = vsel %vm2748, %v2738, 2102212464
        %v2751 = vsel %vm2747, %v2735, %v2750
        %v2752 = vsel %vm2746, %v2749, %v2751
        %v2753 = vsel %vm2745, %v2732, %v2735
        %v2754 = vsel %vm2748, %v2741, 920167782
        %v2755 = vsel %vm2747, %v2738, %v2754
        %v2756 = vsel %vm2746, %v2753, %v2755
        %v2757 = vsel %vm2745, %v2735, %v2738
        %v2758 = vsel %vm2748, %v2744, 1326507024
        %v2759 = vsel %vm2747, %v2741, %v2758
        %v2760 = vsel %vm2746, %v2757, %v2759
        %v2761 = vshll.u32 %v2721, 8
        %v2762 = vmul.u32.u64.compose %v2761, %v2760
        %v2763 = vextract.low.u32 %v2762
        %v2764 = vextract.high.u32 %v2762
        %v2765 = vmul.u32.u64.compose %v2761, %v2756
        %v2766 = vextract.low.u32 %v2765
        %v2767 = vextract.high.u32 %v2765
        %v2768 = vmul.u32 %v2761, %v2752
        %v2769 = vadd.s32 %v2764, %v2766
        %vm2770 = vc.u32 %v2764, %v2766
        %v2771 = vadd.s32 %v2767, 1
        %v2772 = vsel %vm2770, %v2771, %v2767
        %v2773 = vadd.s32 %v2768, %v2772
        %v2774 = vadd.s32 %v2773, 536870912
        %v2775 = vshrl.u32 %v2774, 30
        %v2776 = vshll.u32 %v2775, 30
        %v2777 = vsub.s32 %v2773, %v2776
        %vm2778 = vcmp.lt.s32.totalorder %v2777, 0
        %v2779 = vsub.s32 0, %v2777
        %v2780 = vsel %vm2778, %v2779, %v2777
        %v2781 = vclz %v2780
        %v2782 = vsub.s32 %v2781, 2
        %vm2783 = vcmp.gt.s32.totalorder 0, %v2782
        %v2784 = vsel %vm2783, 0, %v2782
        %v2785 = vsub.s32 32, %v2784
        %v2786 = vshll.u32 %v2777, %v2784
        %v2787 = vshrl.u32 %v2769, %v2785
        %v2788 = vor.u32 %v2786, %v2787
        %v2789 = vsub.s32 4294967266, %v2784
        %v2790 = vadd.s32 %v2789, 127
        %v2791 = vshll.u32 %v2790, 23
        %v2792 = vor.u32 4788187, %v2791
        %v2793 = vand.u32 2147483647, %v2792
        %v2795 = vcvt.s32.f32 %v2788
        %v2796 = vmul.f32 %v2795, %v2793
        %v2797 = vxor.u32 %v2796, 2147483648
        %v2798 = vsel %vm2715, %v2797, %v2796
        %v2799 = vsub.s32 4, %v2775
        %v2800 = vsel %vm2715, %v2799, %v2775
        %v2801 = vsel %vm2714, %v1984, %v2798
        %v2802 = vsel %vm2714, 0, %v2800
        %v2803 = vcosq.f32.pop %v2801
        %v2804 = vsinq.f32.pop %v2801
        %vm2805 = vweird.f32 %v1984
        %v2806 = vadd.s32 %v2802, 3
        %v2807 = vand.u32 %v2806, 3
        %vm2808 = vcmp.lt.s32.totalorder %v2807, 2
        %vm2809 = vcmp.eq.s32.totalorder %v2807, 0
        %v2810 = vxor.u32 %v2804, 2147483648
        %v2811 = vsel %vm2809, %v2803, %v2810
        %vm2812 = vcmp.eq.s32.totalorder %v2807, 2
        %v2813 = vxor.u32 %v2803, 2147483648
        %v2814 = vsel %vm2812, %v2813, %v2804
        %v2815 = vsel %vm2808, %v2811, %v2814
        %v2816 = vsel %vm2805, nan, %v2815
        %v2817 = vmul.f32 %v2088, %v2088
        %v2818 = vmul.f32 %v2192, %v2192
        %v2819 = vmul.f32 %v2296, %v2296
        %v2820 = vmul.f32 %v2400, %v2400
        %v2821 = vmul.f32 %v2504, %v2504
        %v2822 = vmul.f32 %v2608, %v2608
        %v2823 = vmul.f32 %v2712, %v2712
        %v2824 = vmul.f32 %v2816, %v2816
        %2826 = vset.pattern.permute.xlu0 0
        %2827 = vperm.xlu0 %2826, %v1965
        %v2828 = vpop.permute.xlu0 %2827
        %2831 = vset.pattern.permute.xlu0 0
        %2832 = vperm.xlu0 %2831, %v1966
        %v2833 = vpop.permute.xlu0 %2832
        %v2835 = vmul.f32 %v2828, %v2817
        %v2836 = vmul.f32 %v2828, %v2818
        %v2837 = vmul.f32 %v2828, %v2819
        %v2838 = vmul.f32 %v2828, %v2820
        %v2839 = vmul.f32 %v2833, %v2821
        %v2840 = vmul.f32 %v2833, %v2822
        %v2841 = vmul.f32 %v2833, %v2823
        %v2842 = vmul.f32 %v2833, %v2824
        %v2843 = vadd.f32 %v1912, %v2835
        %v2844 = vadd.f32 %v1914, %v2836
        %v2845 = vadd.f32 %v1955, %v2837
        %v2846 = vadd.f32 %v1957, %v2838
        %v2847 = vadd.f32 %v1916, %v2839
        %v2848 = vadd.f32 %v1918, %v2840
        %v2849 = vadd.f32 %v1959, %v2841
        %v2850 = vadd.f32 %v1961, %v2842
        %v2851 = vpack.c.bf16 %v2847, %v2843
        %v2852 = vpack.c.bf16 %v2848, %v2844
        %v2853 = vpack.c.bf16 %v2849, %v2845
        %v2854 = vpack.c.bf16 %v2850, %v2846
        %v2855 = vld [vmem:[%s9] sm:$0xf]
        %v2856 = vld [vmem:[%s9 + $0x4] sm:$0xf]
        %v2857 = vld [vmem:[%s10] sm:$0xff]
        %v2858 = vld [vmem:[%s10 + $0x8] sm:$0xff]
        %2860 = vset.pattern.permute.xlu0 0
        %2861 = vperm.xlu0 %2860, %v2857
        %v2862 = vpop.permute.xlu0 %2861
        %2865 = vset.pattern.permute.xlu0 0
        %2866 = vperm.xlu0 %2865, %v2858
        %v2867 = vpop.permute.xlu0 %2866
        %v2871 = vunpack.c.l.b16 %v2855
        %v2872 = vunpack.c.l.b16 %v2856
        %v2873 = vpack.c.b16 %v2872, %v2871
        %vm2874 = vcmask 130048
        %v2876 = vsel %vm2874, %v2873, 0
        %2878 = vmatprep.subr.bf16.mxu0 %v2852
        %2879 = vmatpush1.bf16.msra.mxu0 %v2851
        %2880 = vmatprep.subr.bf16.mxu0 0
        %2881 = vmatpush1.bf16.msra.mxu0 0
        %2882 = vmatprep.subr.bf16.mxu0 0
        %2883 = vmatpush1.bf16.msra.mxu0 0
        %2884 = vmatprep.subr.bf16.mxu0 0
        %2885 = vmatpush1.bf16.msra.mxu0 0
        %2886 = vmatprep.subr.bf16.mxu0 0
        %2887 = vmatpush1.bf16.msra.mxu0 0
        %2888 = vmatprep.subr.bf16.mxu0 0
        %2889 = vmatpush1.bf16.msra.mxu0 0
        %2890 = vmatprep.subr.bf16.mxu0 0
        %2891 = vmatpush1.bf16.msra.mxu0 0
        %2892 = vmatprep.subr.bf16.mxu0 0
        %2893 = vmatpush1.bf16.msra.mxu0 0
        %2894 = vmatprep.subr.bf16.mxu0 0
        %2895 = vmatpush1.bf16.msra.mxu0 0
        %2896 = vmatprep.subr.bf16.mxu0 0
        %2897 = vmatpush1.bf16.msra.mxu0 0
        %2898 = vmatprep.subr.bf16.mxu0 0
        %2899 = vmatpush1.bf16.msra.mxu0 0
        %2900 = vmatprep.subr.bf16.mxu0 0
        %2901 = vmatpush1.bf16.msra.mxu0 0
        %2902 = vmatprep.subr.bf16.mxu0 0
        %2903 = vmatpush1.bf16.msra.mxu0 0
        %2904 = vmatprep.subr.bf16.mxu0 0
        %2905 = vmatpush1.bf16.msra.mxu0 0
        %2906 = vmatprep.subr.bf16.mxu0 0
        %2907 = vmatpush1.bf16.msra.mxu0 0
        %2908 = vmatprep.subr.bf16.mxu0 0
        %2909 = vmatpush1.bf16.msra.mxu0 0
        %2910 = vmatprep.mubr.bf16.mxu0 0
        %2911 = vmatmul.mubr.bf16.gmra.mrb[0].mxu0 %v2876
        %v2912 = vpop.f32.mrb[0].mxu0
        %v2913 = vadd.f32 %v2862, %v2912
        %v2914 = vpop.f32.mrb[0].mxu0
        %v2915 = vadd.f32 %v2862, %v2914
        %v2916 = vpop.f32.mrb[0].mxu0
        %v2917 = vadd.f32 %v2867, %v2916
        %v2918 = vpop.f32.mrb[0].mxu0
        %v2919 = vadd.f32 %v2867, %v2918
        %2920 = vdwg.mxu0
        %2921 = vmatprep.subr.bf16.mxu0 %v2854
        %2922 = vmatpush1.bf16.msra.mxu0 %v2853
        %2923 = vmatprep.subr.bf16.mxu0 0
        %2924 = vmatpush1.bf16.msra.mxu0 0
        %2925 = vmatprep.subr.bf16.mxu0 0
        %2926 = vmatpush1.bf16.msra.mxu0 0
        %2927 = vmatprep.subr.bf16.mxu0 0
        %2928 = vmatpush1.bf16.msra.mxu0 0
        %2929 = vmatprep.subr.bf16.mxu0 0
        %2930 = vmatpush1.bf16.msra.mxu0 0
        %2931 = vmatprep.subr.bf16.mxu0 0
        %2932 = vmatpush1.bf16.msra.mxu0 0
        %2933 = vmatprep.subr.bf16.mxu0 0
        %2934 = vmatpush1.bf16.msra.mxu0 0
        %2935 = vmatprep.subr.bf16.mxu0 0
        %2936 = vmatpush1.bf16.msra.mxu0 0
        %2937 = vmatprep.subr.bf16.mxu0 0
        %2938 = vmatpush1.bf16.msra.mxu0 0
        %2939 = vmatprep.subr.bf16.mxu0 0
        %2940 = vmatpush1.bf16.msra.mxu0 0
        %2941 = vmatprep.subr.bf16.mxu0 0
        %2942 = vmatpush1.bf16.msra.mxu0 0
        %2943 = vmatprep.subr.bf16.mxu0 0
        %2944 = vmatpush1.bf16.msra.mxu0 0
        %2945 = vmatprep.subr.bf16.mxu0 0
        %2946 = vmatpush1.bf16.msra.mxu0 0
        %2947 = vmatprep.subr.bf16.mxu0 0
        %2948 = vmatpush1.bf16.msra.mxu0 0
        %2949 = vmatprep.subr.bf16.mxu0 0
        %2950 = vmatpush1.bf16.msra.mxu0 0
        %2951 = vmatprep.subr.bf16.mxu0 0
        %2952 = vmatpush1.bf16.msra.mxu0 0
        %2953 = vmatprep.mubr.bf16.mxu0 0
        %2954 = vmatmul.mubr.bf16.gmra.mrb[0].mxu0 %v2876
        %v2955 = vpop.f32.mrb[0].mxu0
        %v2956 = vadd.f32 %v2862, %v2955
        %v2957 = vpop.f32.mrb[0].mxu0
        %v2958 = vadd.f32 %v2862, %v2957
        %v2959 = vpop.f32.mrb[0].mxu0
        %v2960 = vadd.f32 %v2867, %v2959
        %v2961 = vpop.f32.mrb[0].mxu0
        %v2962 = vadd.f32 %v2867, %v2961
        %2963 = vdwg.mxu0
        %v2964 = vadd.f32 %v557, %v2913
        %v2965 = vadd.f32 %v558, %v2915
        %v2966 = vadd.f32 %v559, %v2956
        %v2967 = vadd.f32 %v560, %v2958
        %v2968 = vadd.f32 %v561, %v2917
        %v2969 = vadd.f32 %v562, %v2919
        %v2970 = vadd.f32 %v563, %v2960
        %v2971 = vadd.f32 %v564, %v2962
        %2972 = vst [vmem:[%s529] sm:$0xff] %v2964
        %2973 = vst [vmem:[%s529 + $0x8] sm:$0xff] %v2965
        %2974 = vst [vmem:[%s529 + $0x10] sm:$0xff] %v2966
        %2975 = vst [vmem:[%s529 + $0x18] sm:$0xff] %v2967
        %2976 = vst [vmem:[%s529 + $0x20] sm:$0xff] %v2968
        %2977 = vst [vmem:[%s529 + $0x28] sm:$0xff] %v2969
        %2978 = vst [vmem:[%s529 + $0x30] sm:$0xff] %v2970
        %2979 = vst [vmem:[%s529 + $0x38] sm:$0xff] %v2971
        %s2980 = sand.u32 %s321, 1
        %s2981 = scalar_lea.sflag [#allocation4], %s2980
        %s2982 = sand.u32 %s321, 1
        %s2983 = smul.addr %s2982, 64
        %s2984 = scalar_lea.vmem [#allocation8], %s2983
        // Predicated region
        $region77: #{tpu_custom_call.1} parent=63 // pred_check
          %p2985 = pneg %p331
        $region78: #{tpu_custom_call.1} parent=63 // pred_check_branch
          %2987 = sbr.rel (%p2985) target = $region80
        $region79: #{tpu_custom_call.1} parent=63 // pred_region
          %s2988 = smul.u32 4, %s36
          %s2990 = ssub.s32 1024, 1024
          %2991 = vsyncadd %s2981, %s2990
          %s2992 = smul.addr %s35, 32
          %s2993 = sadd.s32 %s2988, %s2992
          %s2994 = smul.addr %s2993, 128
          %s2995 = scalar_lea.hbm %s11, %s2994
          %s2996 = sshll.u32 %s2984, 4
          %s2997 = int_to_ptr.vmem [resolvable:$true] %s2996
          %3002 = dma.vmem_to_hbm [thread:$0]  %s2997, 1024, %s2995, %s2981, 512, 2048, 32
        $region80: #{tpu_custom_call.1} parent=63 // pred_fallthru
          _
      $region64: #{tpu_custom_call.1} parent=5 // pred_fallthru
        _
      %p3003 = scmp.le.s32.totalorder 2, %s26
      // Predicated region
      $region81: #{tpu_custom_call.1} parent=5 // pred_check
        %p3004 = pneg %p3003
      $region82: #{tpu_custom_call.1} parent=5 // pred_check_branch
        %3006 = sbr.rel (%p3004) target = $region84
      $region83: #{tpu_custom_call.1} parent=5 // pred_region
        %s3007 = ssub.s32 %s26, 2
        // Predicated region
        $region85: #{tpu_custom_call.1} parent=83 // pred_check
          %p3008 = pneg %p337
        $region86: #{tpu_custom_call.1} parent=83 // pred_check_branch
          %3010 = sbr.rel (%p3008) target = $region88
        $region87: #{tpu_custom_call.1} parent=83 // pred_region
          %s3011 = sand.u32 %s322, 1
          %s3012 = scalar_lea.sflag [#allocation4], %s3011
          %s3013 = sand.u32 %s322, 1
          %s3014 = smul.addr %s3013, 64
          %s3015 = scalar_lea.vmem [#allocation8], %s3014
          %3016 = dma.done %s3012, 1024
        $region88: #{tpu_custom_call.1} parent=83 // pred_fallthru
          _
      $region84: #{tpu_custom_call.1} parent=5 // pred_fallthru
        _
    $region6: #{tpu_custom_call.1} parent=1 // loop_footer
      %s30 = sadd.s32 1, %s26
    $region7: #{tpu_custom_call.1} parent=1 // loop_footer_branch
      %25 = sbr.rel target = $region3
    $region8: #{tpu_custom_call.1} parent=1 // loop_exit
      _
    %3017 = vsyncpa [#allocation3], 1
    %s3018 = scalar_lea.sflag [#allocation3], 1
    %3019 = vsyncpa %s3018, 1
    %3020 = vsyncpa [#allocation6], 1
    %s3021 = scalar_lea.sflag [#allocation6], 1
    %3022 = vsyncpa %s3021, 1
    %3023 = vsyncpa [#allocation4], 1
    %s3024 = scalar_lea.sflag [#allocation4], 1
    %3025 = vsyncpa %s3024, 1

</llo_original>
